<compile_context>
chip_gen: v6e
topology: v6e:2x2x1
jax: 0.10.0
libtpu: 0.0.40
codegen_flags: <defaults>
</compile_context>

<pallas_src>
import functools

import jax
import jax.numpy as jnp
from jax import lax
from jax.experimental import pallas as pl
from jax.experimental.pallas import tpu as pltpu

KH = KW = 7
PAD = 3
_MATMUL_MAX_HW = 1024      # (HW, HW) f32 conv matrix = 4 MiB at HW=1024 (x2 channels)


# --------------------------------------------------------------------------- #
# Kernels
# --------------------------------------------------------------------------- #
def _ca_kernel_matmul(b_ref, a_avg_ref, a_max_ref, x_ref, o_ref,
                      sum_ref, max_ref, *, C):
    """Channel mean/max accumulated over C chunks; 7x7 conv as two MXU matmuls."""
    c_idx = pl.program_id(1)

    @pl.when(c_idx == 0)
    def _():
        sum_ref[...] = jnp.zeros_like(sum_ref)
        max_ref[...] = jnp.full_like(max_ref, -jnp.inf)

    # Reduce only this (Nb, Cc, HW) chunk -> bounded f32 temporary.
    blk = x_ref[...].astype(jnp.float32)
    sum_ref[...] = sum_ref[...] + jnp.sum(blk, axis=1)
    max_ref[...] = jnp.maximum(max_ref[...], jnp.max(blk, axis=1))

    @pl.when(c_idx == pl.num_programs(1) - 1)
    def _():
        avg = sum_ref[...] * (1.0 / C)
        mx = max_ref[...]
        # Zero-padded 7x7 conv baked into (HW, HW) banded matrices -> MXU.
        conv = (
            jnp.dot(avg, a_avg_ref[...], preferred_element_type=jnp.float32,
                    precision=lax.Precision.HIGHEST)
            + jnp.dot(mx, a_max_ref[...], preferred_element_type=jnp.float32,
                      precision=lax.Precision.HIGHEST))
        o_ref[:, 0, :] = jax.nn.sigmoid(conv + b_ref[0]).astype(o_ref.dtype)


def _ca_kernel_roll(w_ref, b_ref, x_ref, o_ref, sum_ref, max_ref, *, C, H, W):
    """Fallback for large HW: factorized roll-based 7x7 conv (no conv matrix)."""
    HW = H * W
    c_idx = pl.program_id(1)

    @pl.when(c_idx == 0)
    def _():
        sum_ref[...] = jnp.zeros_like(sum_ref)
        max_ref[...] = jnp.full_like(max_ref, -jnp.inf)

    blk = x_ref[...].astype(jnp.float32)
    sum_ref[...] = sum_ref[...] + jnp.sum(blk, axis=1)
    max_ref[...] = jnp.maximum(max_ref[...], jnp.max(blk, axis=1))

    @pl.when(c_idx == pl.num_programs(1) - 1)
    def _():
        avg = sum_ref[...] * (1.0 / C)
        mx = max_ref[...]

        pos = lax.broadcasted_iota(jnp.int32, (1, HW), 1)
        col = pos % W
        row = pos // W

        # 7 dx-rolled copies per pooled channel; column edge mask folded in once
        # as a {0,1} f32 multiplier (valid: rolling by dy*W preserves the column).
        shifted = []
        for dx in range(-PAD, PAD + 1):
            if dx == 0:
                shifted.append((avg, mx))
                continue
            if dx > 0:
                cmask = (col < (W - dx)).astype(jnp.float32)
            else:
                cmask = (col >= (-dx)).astype(jnp.float32)
            sh = (-dx) % HW
            shifted.append((pltpu.roll(avg, shift=sh, axis=1) * cmask,
                            pltpu.roll(mx, shift=sh, axis=1) * cmask))

        acc = jnp.zeros_like(avg)
        for dy in range(-PAD, PAD + 1):
            ki = dy + PAD
            inner = None
            for dxi in range(KW):            # kj == dxi, dx == dxi - PAD
                t_a, t_m = shifted[dxi]
                term = (w_ref[ki * KW + dxi] * t_a
                        + w_ref[KH * KW + ki * KW + dxi] * t_m)
                inner = term if inner is None else inner + term
            if dy == 0:
                acc = acc + inner
            else:
                if dy > 0:
                    rmask = (row < (H - dy)).astype(jnp.float32)
                else:
                    rmask = (row >= (-dy)).astype(jnp.float32)
                sh = (-(dy * W)) % HW
                acc = acc + pltpu.roll(inner, shift=sh, axis=1) * rmask

        o_ref[:, 0, :] = jax.nn.sigmoid(acc + b_ref[0]).astype(o_ref.dtype)


# --------------------------------------------------------------------------- #
# Wrapper helpers
# --------------------------------------------------------------------------- #
def _build_conv_matrices(weight, H, W):
    """Bake Conv2d(2->1, k=7, pad=3) into two (HW, HW) banded matrices (f32)."""
    HW = H * W
    w = weight.astype(jnp.float32).reshape(2, KH, KW)
    r = jnp.repeat(jnp.arange(H, dtype=jnp.int32), W)        # (HW,) row of each pos
    c = jnp.tile(jnp.arange(W, dtype=jnp.int32), H)          # (HW,) col of each pos
    dy = r[:, None] - r[None, :]                              # r_in - r_out
    dx = c[:, None] - c[None, :]                              # c_in - c_out
    valid = (jnp.abs(dy) <= PAD) & (jnp.abs(dx) <= PAD)
    ki = jnp.clip(dy + PAD, 0, KH - 1)
    kj = jnp.clip(dx + PAD, 0, KW - 1)
    a_avg = jnp.where(valid, w[0, ki, kj], 0.0)               # (HW_in, HW_out)
    a_max = jnp.where(valid, w[1, ki, kj], 0.0)
    return a_avg, a_max


def _vmem_limit_bytes():
    cap = 64 * 1024 * 1024                                    # v7x-safe default
    try:
        info = pltpu.get_tpu_info()
        cap = int(getattr(info, "vmem_capacity_bytes", cap))
    except Exception:
        pass
    return max(32 * 1024 * 1024, (cap * 3) // 4)


def _choose_blocks(N, C, HW, in_bytes, out_bytes, conv_mat_bytes, limit,
                   use_matmul, max_nb=None, max_cc=None):
    """Pick (batch block Nb, channel chunk Cc) against the real VMEM residents."""
    budget = int(limit * 0.8)
    fixed = 2 * conv_mat_bytes + (1 << 20)     # resident conv matrices + slack

    temps_rows = 8 if use_matmul else 24       # transient f32 (1, HW)-rows per image

    def per_nb(cc):
        x_blk = 2 * cc * HW * in_bytes         # double-buffered input block
        f32_tmp = cc * HW * 4                  # in-kernel f32 chunk temporary
        out_blk = 2 * HW * out_bytes           # double-buffered output block
        scratch = 2 * HW * 4                   # sum/max accumulators
        temps = temps_rows * HW * 4
        return x_blk + f32_tmp + out_blk + scratch + temps

    # Cc must equal C or be a multiple of the dtype's sublane tile.
    sub = {4: 8, 2: 16, 1: 32}.get(in_bytes, 8)
    divs = [d for d in range(1, C + 1) if C % d == 0]
    cands = sorted({C} | {d for d in divs if d % sub == 0}, reverse=True)
    if max_cc is not None:
        cands = [d for d in cands if d <= max_cc] or [min(cands)]

    for cc in cands:
        if fixed + per_nb(cc) <= budget:
            nb = int(min(N, max(1, (budget - fixed) // per_nb(cc))))
            if max_nb is not None:
                nb = min(nb, max_nb)
            return nb, int(cc)
    return 1, int(min(cands))                  # last resort; compiler will complain


# --------------------------------------------------------------------------- #
# Public entry point
# --------------------------------------------------------------------------- #
def ca_module(x, weight, bias, *, force_roll=False,
              max_batch_block=None, max_channel_chunk=None):
    """x: (N, C, H, W); weight: (1, 2, 7, 7); bias: (1,). Returns (N, 1, H, W)."""
    N, C, H, W = x.shape
    HW = H * W
    in_bytes = x.dtype.itemsize
    out_dtype = x.dtype
    out_bytes = jnp.dtype(out_dtype).itemsize

    use_matmul = (not force_roll) and (HW <= _MATMUL_MAX_HW)
    conv_mat_bytes = 2 * HW * HW * 4 if use_matmul else 0

    limit = _vmem_limit_bytes()
    Nb, Cc = _choose_blocks(N, C, HW, in_bytes, out_bytes, conv_mat_bytes, limit,
                            use_matmul, max_nb=max_batch_block,
                            max_cc=max_channel_chunk)
    n_blocks = (N + Nb - 1) // Nb
    c_chunks = C // Cc
    n_pad = n_blocks * Nb

    x_flat = x.reshape(N, C, HW)
    if n_pad != N:                              # ragged batch: pad (kept rows exact)
        x_flat = jnp.pad(x_flat, ((0, n_pad - N), (0, 0), (0, 0)))

    b = bias.reshape(-1).astype(jnp.float32)

    x_spec = pl.BlockSpec((Nb, Cc, HW), lambda n, c: (n, c, 0))
    if use_matmul:
        a_avg, a_max = _build_conv_matrices(weight, H, W)
        kernel = functools.partial(_ca_kernel_matmul, C=C)
        in_specs = [
            pl.BlockSpec(memory_space=pltpu.MemorySpace.SMEM),       # bias
            pl.BlockSpec((HW, HW), lambda n, c: (0, 0)),             # A_avg (resident)
            pl.BlockSpec((HW, HW), lambda n, c: (0, 0)),             # A_max (resident)
            x_spec,                                                   # images
        ]
        operands = (b, a_avg, a_max, x_flat)
    else:
        w_flat = weight.reshape(-1).astype(jnp.float32)              # (2*49,)
        kernel = functools.partial(_ca_kernel_roll, C=C, H=H, W=W)
        in_specs = [
            pl.BlockSpec(memory_space=pltpu.MemorySpace.SMEM),       # conv weight
            pl.BlockSpec(memory_space=pltpu.MemorySpace.SMEM),       # bias
            x_spec,                                                   # images
        ]
        operands = (w_flat, b, x_flat)

    out = pl.pallas_call(
        kernel,
        out_shape=jax.ShapeDtypeStruct((n_pad, 1, HW), out_dtype),
        grid_spec=pltpu.PrefetchScalarGridSpec(
            num_scalar_prefetch=0,
            grid=(n_blocks, c_chunks),
            in_specs=in_specs,
            out_specs=pl.BlockSpec((Nb, 1, HW), lambda n, c: (n, 0, 0)),
            scratch_shapes=[pltpu.VMEM((Nb, HW), jnp.float32),       # running sum
                            pltpu.VMEM((Nb, HW), jnp.float32)],      # running max
        ),
        compiler_params=pltpu.CompilerParams(
            dimension_semantics=("parallel", "arbitrary"),
            vmem_limit_bytes=int(limit),
        ),
    )(*operands)
    return out[:N].reshape(N, 1, H, W)


# --------------------------------------------------------------------------- #
# Reference & test
# --------------------------------------------------------------------------- #
def ca_reference(x, weight, bias):
    xf = x.astype(jnp.float32)
    avg = jnp.mean(xf, axis=1, keepdims=True)
    mx = jnp.max(xf, axis=1, keepdims=True)
    o = jnp.concatenate([avg, mx], axis=1)
    o = lax.conv_general_dilated(
        o, weight.astype(jnp.float32), window_strides=(1, 1),
        padding=((PAD, PAD), (PAD, PAD)),
        dimension_numbers=("NCHW", "OIHW", "NCHW"),
        precision=lax.Precision.HIGHEST)
    return jax.nn.sigmoid(o + bias.astype(jnp.float32).reshape(1, -1, 1, 1))


if __name__ == "__main__":
    key = jax.random.PRNGKey(0)
    kx, kw, kb, kx2, kw2, kb2, kx3, kx4 = jax.random.split(key, 8)

    def make_params(kw_, kb_):
        w = jax.random.normal(kw_, (1, 2, KH, KW), jnp.float32) * 0.1
        b = jax.random.normal(kb_, (1,), jnp.float32) * 0.1
        return w, b

    # 1) Main small shape -> MXU (banded-matrix) path.
    w1, b1 = make_params(kw, kb)
    x1 = jax.random.normal(kx, (2, 4, 16, 16), jnp.float32)
    out1 = jax.block_until_ready(ca_module(x1, w1, b1))
    ref1 = ca_reference(x1, w1, b1)
    assert out1.shape == (2, 1, 16, 16), out1.shape
    assert jnp.allclose(out1, ref1, atol=1e-4, rtol=1e-4), (
        float(jnp.max(jnp.abs(out1 - ref1))))

    # 2) Non-square spatial dims, forced roll-fallback path.
    w2, b2 = make_params(kw2, kb2)
    x2 = jax.random.normal(kx2, (3, 6, 12, 20), jnp.float32)
    out2 = jax.block_until_ready(ca_module(x2, w2, b2, force_roll=True))
    ref2 = ca_reference(x2, w2, b2)
    assert jnp.allclose(out2, ref2, atol=1e-4, rtol=1e-4), (
        float(jnp.max(jnp.abs(out2 - ref2))))

    # 3) Ragged batch (padded) + chunked channel reduction (multi-step grid).
    x3 = jax.random.normal(kx3, (5, 16, 8, 8), jnp.float32)
    out3 = jax.block_until_ready(
        ca_module(x3, w1, b1, max_batch_block=2, max_channel_chunk=8))
    ref3 = ca_reference(x3, w1, b1)
    assert jnp.allclose(out3, ref3, atol=1e-4, rtol=1e-4), (
        float(jnp.max(jnp.abs(out3 - ref3))))

    # 4) bf16 input (f32 accumulation in-kernel, bf16 output).
    x4 = jax.random.normal(kx4, (2, 4, 16, 16), jnp.bfloat16)
    out4 = jax.block_until_ready(ca_module(x4, w1, b1))
    ref4 = ca_reference(x4, w1, b1)
    assert out4.dtype == jnp.bfloat16
    assert jnp.allclose(out4.astype(jnp.float32), ref4, atol=1e-2, rtol=1e-2), (
        float(jnp.max(jnp.abs(out4.astype(jnp.float32) - ref4))))

    print("KERNEL_OK")
</pallas_src>

<mosaic_0001>
module attributes {stable_mosaic.version = 11 : i64} {
  func.func @_ca_kernel_matmul(%arg0: i32, %arg1: i32, %arg2: memref<1xf32, #tpu.memory_space<smem>>, %arg3: memref<256x256xf32, #tpu.memory_space<vmem>>, %arg4: memref<256x256xf32, #tpu.memory_space<vmem>>, %arg5: memref<2x4x256xf32, #tpu.memory_space<vmem>>, %arg6: memref<2x1x256xf32, #tpu.memory_space<vmem>>, %arg7: memref<2x256xf32, #tpu.memory_space<vmem>>, %arg8: memref<2x256xf32, #tpu.memory_space<vmem>>) attributes {dimension_semantics = [#tpu.dimension_semantics<parallel>, #tpu.dimension_semantics<arbitrary>], iteration_bounds = array<i64: 1, 1>, scalar_prefetch = 0 : i64, scratch_operands = 2 : i64, tpu.core_type = #tpu.core_type<tc>, window_params = [{transform_indices = @transform_0, window_bounds = array<i64: 1>}, {pipeline_mode = #tpu.pipeline_mode<synchronous>, transform_indices = @transform_1, window_bounds = array<i64: 256, 256>}, {pipeline_mode = #tpu.pipeline_mode<synchronous>, transform_indices = @transform_2, window_bounds = array<i64: 256, 256>}, {transform_indices = @transform_3, window_bounds = array<i64: 2, 4, 256>}, {transform_indices = @transform_4, window_bounds = array<i64: 2, 1, 256>}]} {
    %c0_i32 = arith.constant 0 : i32
    %0 = arith.cmpi eq, %arg1, %c0_i32 : i32
    %1 = arith.extui %0 : i1 to i32
    %c0_i32_0 = arith.constant 0 : i32
    %2 = arith.cmpi ne, %1, %c0_i32_0 : i32
    scf.if %2 {
      %cst_14 = arith.constant 0.000000e+00 : f32
      %15 = vector.broadcast %cst_14 : f32 to vector<2x256xf32>
      %c0_15 = arith.constant 0 : index
      %c0_16 = arith.constant 0 : index
      %16 = vector.load %arg7[%c0_15, %c0_16] : memref<2x256xf32, #tpu.memory_space<vmem>>, vector<2x256xf32>
      tpu.vector_store %arg7[%c0_15, %c0_16], %15 {strides = array<i32>} : memref<2x256xf32, #tpu.memory_space<vmem>>, vector<2x256xf32>,
      %cst_17 = arith.constant 0xFF800000 : f32
      %17 = vector.broadcast %cst_17 : f32 to vector<2x256xf32>
      %c0_18 = arith.constant 0 : index
      %c0_19 = arith.constant 0 : index
      %18 = vector.load %arg8[%c0_18, %c0_19] : memref<2x256xf32, #tpu.memory_space<vmem>>, vector<2x256xf32>
      tpu.vector_store %arg8[%c0_18, %c0_19], %17 {strides = array<i32>} : memref<2x256xf32, #tpu.memory_space<vmem>>, vector<2x256xf32>,
    } else {
    }
    %c0 = arith.constant 0 : index
    %c0_1 = arith.constant 0 : index
    %c0_2 = arith.constant 0 : index
    %3 = vector.load %arg5[%c0, %c0_1, %c0_2] : memref<2x4x256xf32, #tpu.memory_space<vmem>>, vector<2x4x256xf32>
    %c0_3 = arith.constant 0 : index
    %c0_4 = arith.constant 0 : index
    %4 = vector.load %arg7[%c0_3, %c0_4] : memref<2x256xf32, #tpu.memory_space<vmem>>, vector<2x256xf32>
    %cst = arith.constant dense<0.000000e+00> : vector<2x256xf32>
    %5 = vector.multi_reduction <add>, %3, %cst [1] : vector<2x4x256xf32> to vector<2x256xf32>
    %6 = arith.addf %4, %5 : vector<2x256xf32>
    %c0_5 = arith.constant 0 : index
    %c0_6 = arith.constant 0 : index
    %7 = vector.load %arg7[%c0_5, %c0_6] : memref<2x256xf32, #tpu.memory_space<vmem>>, vector<2x256xf32>
    tpu.vector_store %arg7[%c0_5, %c0_6], %6 {strides = array<i32>} : memref<2x256xf32, #tpu.memory_space<vmem>>, vector<2x256xf32>,
    %c0_7 = arith.constant 0 : index
    %c0_8 = arith.constant 0 : index
    %8 = vector.load %arg8[%c0_7, %c0_8] : memref<2x256xf32, #tpu.memory_space<vmem>>, vector<2x256xf32>
    %cst_9 = arith.constant dense<0xFF800000> : vector<2x256xf32>
    %9 = vector.multi_reduction <maximumf>, %3, %cst_9 [1] : vector<2x4x256xf32> to vector<2x256xf32>
    %10 = arith.maximumf %8, %9 : vector<2x256xf32>
    %c0_10 = arith.constant 0 : index
    %c0_11 = arith.constant 0 : index
    %11 = vector.load %arg8[%c0_10, %c0_11] : memref<2x256xf32, #tpu.memory_space<vmem>>, vector<2x256xf32>
    tpu.vector_store %arg8[%c0_10, %c0_11], %10 {strides = array<i32>} : memref<2x256xf32, #tpu.memory_space<vmem>>, vector<2x256xf32>,
    %c0_i32_12 = arith.constant 0 : i32
    %12 = arith.cmpi eq, %arg1, %c0_i32_12 : i32
    %13 = arith.extui %12 : i1 to i32
    %c0_i32_13 = arith.constant 0 : i32
    %14 = arith.cmpi ne, %13, %c0_i32_13 : i32
    scf.if %14 {
      %c0_14 = arith.constant 0 : index
      %c0_15 = arith.constant 0 : index
      %15 = vector.load %arg7[%c0_14, %c0_15] : memref<2x256xf32, #tpu.memory_space<vmem>>, vector<2x256xf32>
      %cst_16 = arith.constant 2.500000e-01 : f32
      %16 = vector.broadcast %cst_16 : f32 to vector<2x256xf32>
      %17 = arith.mulf %15, %16 : vector<2x256xf32>
      %c0_17 = arith.constant 0 : index
      %c0_18 = arith.constant 0 : index
      %18 = vector.load %arg8[%c0_17, %c0_18] : memref<2x256xf32, #tpu.memory_space<vmem>>, vector<2x256xf32>
      %c0_19 = arith.constant 0 : index
      %c0_20 = arith.constant 0 : index
      %19 = vector.load %arg3[%c0_19, %c0_20] : memref<256x256xf32, #tpu.memory_space<vmem>>, vector<256x256xf32>
      %cst_21 = arith.constant dense<0.000000e+00> : vector<2x256xf32>
      %20 = tpu.matmul %17, %19, %cst_21 {dimension_numbers = #tpu.dot_dimension_numbers<[1], [0], [0], [1], [0, 0, 1, 1], [], []>, precision = #tpu.contract_precision<fp32>} : vector<2x256xf32>, vector<256x256xf32>, vector<2x256xf32> -> vector<2x256xf32>
      %c0_22 = arith.constant 0 : index
      %c0_23 = arith.constant 0 : index
      %21 = vector.load %arg4[%c0_22, %c0_23] : memref<256x256xf32, #tpu.memory_space<vmem>>, vector<256x256xf32>
      %cst_24 = arith.constant dense<0.000000e+00> : vector<2x256xf32>
      %22 = tpu.matmul %18, %21, %cst_24 {dimension_numbers = #tpu.dot_dimension_numbers<[1], [0], [0], [1], [0, 0, 1, 1], [], []>, precision = #tpu.contract_precision<fp32>} : vector<2x256xf32>, vector<256x256xf32>, vector<2x256xf32> -> vector<2x256xf32>
      %23 = arith.addf %20, %22 : vector<2x256xf32>
      %c0_25 = arith.constant 0 : index
      %24 = memref.load %arg2[%c0_25] : memref<1xf32, #tpu.memory_space<smem>>
      %25 = vector.broadcast %24 : f32 to vector<2x256xf32>
      %26 = arith.addf %23, %25 : vector<2x256xf32>
      %27 = arith.negf %26 : vector<2x256xf32>
      %28 = math.exp %27 : vector<2x256xf32>
      %cst_26 = arith.constant 1.000000e+00 : f32
      %29 = vector.broadcast %cst_26 : f32 to vector<2x256xf32>
      %30 = arith.addf %29, %28 : vector<2x256xf32>
      %31 = arith.divf %29, %30 : vector<2x256xf32>
      %c0_27 = arith.constant 0 : index
      %c0_28 = arith.constant 0 : index
      %c0_29 = arith.constant 0 : index
      %32 = vector.load %arg6[%c0_27, %c0_28, %c0_29] : memref<2x1x256xf32, #tpu.memory_space<vmem>>, vector<2x1x256xf32>
      %33 = vector.shape_cast %32 : vector<2x1x256xf32> to vector<2x256xf32>
      %34 = vector.shape_cast %31 : vector<2x256xf32> to vector<2x1x256xf32>
      tpu.vector_store %arg6[%c0_27, %c0_28, %c0_29], %34 {strides = array<i32>} : memref<2x1x256xf32, #tpu.memory_space<vmem>>, vector<2x1x256xf32>,
    } else {
    }
    return
  }
  func.func @transform_0(%arg0: i32, %arg1: i32) -> i32 {
    %c0_i32 = arith.constant 0 : i32
    %c0_i32_0 = arith.constant 0 : i32
    return %c0_i32 : i32
  }
  func.func @transform_1(%arg0: i32, %arg1: i32) -> (i32, i32) {
    %c0_i32 = arith.constant 0 : i32
    %c0_i32_0 = arith.constant 0 : i32
    %c0_i32_1 = arith.constant 0 : i32
    return %c0_i32, %c0_i32_0 : i32, i32
  }
  func.func @transform_2(%arg0: i32, %arg1: i32) -> (i32, i32) {
    %c0_i32 = arith.constant 0 : i32
    %c0_i32_0 = arith.constant 0 : i32
    %c0_i32_1 = arith.constant 0 : i32
    return %c0_i32, %c0_i32_0 : i32, i32
  }
  func.func @transform_3(%arg0: i32, %arg1: i32) -> (i32, i32, i32) {
    %c0_i32 = arith.constant 0 : i32
    %c0_i32_0 = arith.constant 0 : i32
    return %arg0, %arg1, %c0_i32 : i32, i32, i32
  }
  func.func @transform_4(%arg0: i32, %arg1: i32) -> (i32, i32, i32) {
    %c0_i32 = arith.constant 0 : i32
    %c0_i32_0 = arith.constant 0 : i32
    %c0_i32_1 = arith.constant 0 : i32
    return %arg0, %c0_i32, %c0_i32_0 : i32, i32, i32
  }
}

</mosaic_0001>

<llo_original>
// kernel: tpu_custom_call.1
$region0: #{tpu_custom_call.1}
  #allocation0 [shape = 'u32[]', space=smem, size = 0x4, offset = 0x4, fixed_abs, tag = 'smem constant byte address 0x4 - core index']
  #allocation1 [shape = 'u32[144,128]{1,0:T(1,128)}', space=vmem, size = 0x12000, scoped, tag = 'internal scratch']
  #allocation2 [shape = 'f32[2,256]{1,0:T(2,128)}', space=vmem, size = 0x800, scoped, tag = 'scratch operand']
  #allocation3 [shape = 'f32[2,256]{1,0:T(2,128)}', space=vmem, size = 0x800, scoped, tag = 'scratch operand']
  #allocation4 [shape = 'f32[1]{0:T(128)S(6)}', space=smem, size = 0x200, scoped, tag = 'scoped memory for tpu_custom_call.1']
  %s0 = inlined_call_operand.<no memory space> [shape: f32[1], index: 0, kind: input, shape index: {}]
  %s1 = inlined_call_operand.hbm [shape: f32[256,256], index: 1, kind: input, shape index: {}]
  %s2 = inlined_call_operand.hbm [shape: f32[256,256], index: 2, kind: input, shape index: {}]
  %s3 = inlined_call_operand.hbm [shape: f32[2,4,256], index: 3, kind: input, shape index: {}]
  %s4 = inlined_call_operand.hbm [shape: f32[2,1,256], index: 4, kind: output, shape index: {}]
  %s5 = sld [smem:[#allocation0]]
  $region46: #{tpu_custom_call.1} parent=0
    _
  %s7 = ssub.s32 1, %s5
  %s8 = scalar_select 0, %s7, %s5
  %9 = sst [smem:[#allocation4]] %s0
  $region1: #{tpu_custom_call.1} parent=0
    #allocation5 [shape = 'u8[262144]{0}', space=vmem, size = 0x40000, scoped, tag = 'input window, operand 1, single buffered']
    #allocation6 [shape = 's32[1]{0}', space=sflag, size = 0x4, scoped, tag = 'scoped memory for tpu_custom_call.1']
    #allocation7 [shape = 's32[1]{0}', space=sflag, size = 0x4, scoped, tag = 'scoped memory for tpu_custom_call.1']
    #allocation8 [shape = 'u8[262144]{0}', space=vmem, size = 0x40000, scoped, tag = 'input window, operand 2, single buffered']
    #allocation9 [shape = 's32[1]{0}', space=sflag, size = 0x4, scoped, tag = 'scoped memory for tpu_custom_call.1']
    #allocation10 [shape = 'u8[8192]{0}', space=vmem, size = 0x2000, scoped, tag = 'input window, operand 3, single buffered']
    #allocation11 [shape = 'u8[2048]{0}', space=vmem, size = 0x800, scoped, tag = 'output window, operand 0, single buffered']
    %10 = vsyncpa [#allocation6], 0
    %11 = vsyncpa [#allocation9], 0
    %12 = vsyncpa [#allocation7], 0
    // Predicated region
    $region2: #{tpu_custom_call.1} parent=1 // pred_check
      _
    $region3: #{tpu_custom_call.1} parent=1 // pred_check_branch
      %14 = sbr.rel (0) target = $region5
    $region4: #{tpu_custom_call.1} parent=1 // pred_region
      _
    $region5: #{tpu_custom_call.1} parent=1 // pred_fallthru
      _
    // Predicated region
    $region6: #{tpu_custom_call.1} parent=1 // pred_check
      _
    $region7: #{tpu_custom_call.1} parent=1 // pred_check_branch
      %16 = sbr.rel (0) target = $region9
    $region8: #{tpu_custom_call.1} parent=1 // pred_region
      %s18 = ssub.s32 8192, 8192
      %19 = vsyncadd [#allocation6], %s18
      %s20 = sshll.u32 [#allocation5], 4
      %s21 = int_to_ptr.vmem [resolvable:$true] %s20
      %26 = dma.hbm_to_vmem [thread:$0]  %s1, 8192, %s21, [#allocation6], 256, 256, 16
    $region9: #{tpu_custom_call.1} parent=1 // pred_fallthru
      _
    // Predicated region
    $region10: #{tpu_custom_call.1} parent=1 // pred_check
      _
    $region11: #{tpu_custom_call.1} parent=1 // pred_check_branch
      %28 = sbr.rel (0) target = $region13
    $region12: #{tpu_custom_call.1} parent=1 // pred_region
      %s30 = ssub.s32 8192, 8192
      %31 = vsyncadd [#allocation9], %s30
      %s32 = sshll.u32 [#allocation8], 4
      %s33 = int_to_ptr.vmem [resolvable:$true] %s32
      %38 = dma.hbm_to_vmem [thread:$0]  %s2, 8192, %s33, [#allocation9], 256, 256, 16
    $region13: #{tpu_custom_call.1} parent=1 // pred_fallthru
      _
    // Predicated region
    $region14: #{tpu_custom_call.1} parent=1 // pred_check
      _
    $region15: #{tpu_custom_call.1} parent=1 // pred_check_branch
      %40 = sbr.rel (0) target = $region17
    $region16: #{tpu_custom_call.1} parent=1 // pred_region
      %s42 = ssub.s32 256, 256
      %43 = vsyncadd [#allocation9], %s42
      %s44 = sshll.u32 [#allocation10], 4
      %s45 = int_to_ptr.vmem [resolvable:$true] %s44
      %50 = dma.hbm_to_vmem [thread:$0]  %s3, 256, %s45, [#allocation9], 128, 128, 8
    $region17: #{tpu_custom_call.1} parent=1 // pred_fallthru
      _
    // Predicated region
    $region18: #{tpu_custom_call.1} parent=1 // pred_check
      _
    $region19: #{tpu_custom_call.1} parent=1 // pred_check_branch
      %52 = sbr.rel (0) target = $region21
    $region20: #{tpu_custom_call.1} parent=1 // pred_region
      %53 = dma.done [#allocation6], 8192
    $region21: #{tpu_custom_call.1} parent=1 // pred_fallthru
      _
    // Predicated region
    $region22: #{tpu_custom_call.1} parent=1 // pred_check
      _
    $region23: #{tpu_custom_call.1} parent=1 // pred_check_branch
      %55 = sbr.rel (0) target = $region25
    $region24: #{tpu_custom_call.1} parent=1 // pred_region
      %56 = dma.done [#allocation9], 8192
    $region25: #{tpu_custom_call.1} parent=1 // pred_fallthru
      _
    // Predicated region
    $region26: #{tpu_custom_call.1} parent=1 // pred_check
      _
    $region27: #{tpu_custom_call.1} parent=1 // pred_check_branch
      %58 = sbr.rel (0) target = $region29
    $region28: #{tpu_custom_call.1} parent=1 // pred_region
      %59 = dma.done [#allocation9], 256
    $region29: #{tpu_custom_call.1} parent=1 // pred_fallthru
      _
    %p60 = scmp.eq.s32.totalorder 0, 0
    // Predicated region
    $region30: #{tpu_custom_call.1} parent=1 // pred_check
      %p61 = pneg %p60
    $region31: #{tpu_custom_call.1} parent=1 // pred_check_branch
      %63 = sbr.rel (%p61) target = $region33
    $region32: #{tpu_custom_call.1} parent=1 // pred_region
      %64 = vst [vmem:[#allocation2] sm:$0xf] 0.0
      %65 = vst [vmem:[#allocation3] sm:$0xf] -inf
    $region33: #{tpu_custom_call.1} parent=1 // pred_fallthru
      _
    %v66 = vld [vmem:[#allocation10] sm:$0xff]
    %v67 = vld [vmem:[#allocation10 + $0x8] sm:$0xff]
    %v68 = vld [vmem:[#allocation2] sm:$0xf]
    %v71 = vcombine.high %v66, %v66
    %v72 = vcombine.high %v67, %v67
    %vm75 = vcmask 1043456
    %v76 = vsel %vm75, %v66, 0.0
    %v77 = vrot.slane %v76, 4
    %v78 = vadd.f32 %v76, %v77
    %v79 = vrot.slane %v78, 2
    %v80 = vadd.f32 %v78, %v79
    %v81 = vrot.slane %v80, 1
    %v82 = vadd.f32 %v80, %v81
    %v83 = vsel %vm75, %v71, 0.0
    %v84 = vrot.slane %v83, 4
    %v85 = vadd.f32 %v83, %v84
    %v86 = vrot.slane %v85, 2
    %v87 = vadd.f32 %v85, %v86
    %v88 = vrot.slane %v87, 1
    %v89 = vadd.f32 %v87, %v88
    %v90 = vsel %vm75, %v67, 0.0
    %v91 = vrot.slane %v90, 4
    %v92 = vadd.f32 %v90, %v91
    %v93 = vrot.slane %v92, 2
    %v94 = vadd.f32 %v92, %v93
    %v95 = vrot.slane %v94, 1
    %v96 = vadd.f32 %v94, %v95
    %v97 = vsel %vm75, %v72, 0.0
    %v98 = vrot.slane %v97, 4
    %v99 = vadd.f32 %v97, %v98
    %v100 = vrot.slane %v99, 2
    %v101 = vadd.f32 %v99, %v100
    %v102 = vrot.slane %v101, 1
    %v103 = vadd.f32 %v101, %v102
    %v108 = vcombine.low %v82, %v89
    %v110 = vunpack.c.l.s4 1983009808
    %v111 = vunpack.c.0.s8 %v110
    %v112 = vlaneseq
    %v113 = vshrl.u32 %v112, 7
    %v114 = vsub.s32 %v111, %v113
    %v115 = vrot.slane %v108, %v114
    %v116 = vcombine.low %v96, %v103
    %v118 = vunpack.c.l.s4 1983009808
    %v119 = vunpack.c.0.s8 %v118
    %v120 = vlaneseq
    %v121 = vshrl.u32 %v120, 7
    %v122 = vsub.s32 %v119, %v121
    %v123 = vrot.slane %v116, %v122
    %vm124 = vcmask 1044484
    %v125 = vsel %vm124, %v115, %v115
    %vm126 = vcmask 1046534
    %v127 = vsel %vm126, %v115, %v125
    %v128 = vrot.slane %v123, 7
    %vm129 = vcmask 1041409
    %v130 = vsel %vm129, %v128, %v127
    %vm131 = vcmask 1043459
    %v132 = vsel %vm131, %v128, %v130
    %vm133 = vcmask 1045509
    %v134 = vsel %vm133, %v128, %v132
    %vm135 = vcmask 1047559
    %v136 = vsel %vm135, %v128, %v134
    %v138 = vadd.f32 %v68, %v136
    %139 = vst [vmem:[#allocation2] sm:$0xf] %v138
    %v140 = vld [vmem:[#allocation3] sm:$0xf]
    %v141 = vsel %vm75, %v66, -inf
    %v142 = vrot.slane %v141, 4
    %v143 = vmax.f32 %v141, %v142
    %v144 = vrot.slane %v143, 2
    %v145 = vmax.f32 %v143, %v144
    %v146 = vrot.slane %v145, 1
    %v147 = vmax.f32 %v145, %v146
    %v148 = vsel %vm75, %v71, -inf
    %v149 = vrot.slane %v148, 4
    %v150 = vmax.f32 %v148, %v149
    %v151 = vrot.slane %v150, 2
    %v152 = vmax.f32 %v150, %v151
    %v153 = vrot.slane %v152, 1
    %v154 = vmax.f32 %v152, %v153
    %v155 = vsel %vm75, %v67, -inf
    %v156 = vrot.slane %v155, 4
    %v157 = vmax.f32 %v155, %v156
    %v158 = vrot.slane %v157, 2
    %v159 = vmax.f32 %v157, %v158
    %v160 = vrot.slane %v159, 1
    %v161 = vmax.f32 %v159, %v160
    %v162 = vsel %vm75, %v72, -inf
    %v163 = vrot.slane %v162, 4
    %v164 = vmax.f32 %v162, %v163
    %v165 = vrot.slane %v164, 2
    %v166 = vmax.f32 %v164, %v165
    %v167 = vrot.slane %v166, 1
    %v168 = vmax.f32 %v166, %v167
    %v173 = vcombine.low %v147, %v154
    %v175 = vunpack.c.l.s4 1983009808
    %v176 = vunpack.c.0.s8 %v175
    %v177 = vlaneseq
    %v178 = vshrl.u32 %v177, 7
    %v179 = vsub.s32 %v176, %v178
    %v180 = vrot.slane %v173, %v179
    %v181 = vcombine.low %v161, %v168
    %v183 = vunpack.c.l.s4 1983009808
    %v184 = vunpack.c.0.s8 %v183
    %v185 = vlaneseq
    %v186 = vshrl.u32 %v185, 7
    %v187 = vsub.s32 %v184, %v186
    %v188 = vrot.slane %v181, %v187
    %v189 = vsel %vm124, %v180, %v180
    %v190 = vsel %vm126, %v180, %v189
    %v191 = vrot.slane %v188, 7
    %v192 = vsel %vm129, %v191, %v190
    %v193 = vsel %vm131, %v191, %v192
    %v194 = vsel %vm133, %v191, %v193
    %v195 = vsel %vm135, %v191, %v194
    %v197 = vmax.f32 %v140, %v195
    %198 = vst [vmem:[#allocation3] sm:$0xf] %v197
    // Predicated region
    $region34: #{tpu_custom_call.1} parent=1 // pred_check
      %p199 = pneg %p60
    $region35: #{tpu_custom_call.1} parent=1 // pred_check_branch
      %201 = sbr.rel (%p199) target = $region37
    $region36: #{tpu_custom_call.1} parent=1 // pred_region
      %v202 = vld [vmem:[#allocation2] sm:$0xf]
      %v203 = vmul.f32 %v202, 0.25
      %v204 = vld [vmem:[#allocation3] sm:$0xf]
      %v205 = vld [vmem:[#allocation5] sm:$0xff]
      %v206 = vld [vmem:[#allocation5 + $0x8] sm:$0xff]
      %v207 = vld [vmem:[#allocation5 + $0x10] sm:$0xff]
      %v208 = vld [vmem:[#allocation5 + $0x18] sm:$0xff]
      %v209 = vld [vmem:[#allocation5 + $0x20] sm:$0xff]
      %v210 = vld [vmem:[#allocation5 + $0x28] sm:$0xff]
      %v211 = vld [vmem:[#allocation5 + $0x30] sm:$0xff]
      %v212 = vld [vmem:[#allocation5 + $0x38] sm:$0xff]
      %v213 = vld [vmem:[#allocation5 + $0x40] sm:$0xff]
      %v214 = vld [vmem:[#allocation5 + $0x48] sm:$0xff]
      %v215 = vld [vmem:[#allocation5 + $0x50] sm:$0xff]
      %v216 = vld [vmem:[#allocation5 + $0x58] sm:$0xff]
      %v217 = vld [vmem:[#allocation5 + $0x60] sm:$0xff]
      %v218 = vld [vmem:[#allocation5 + $0x68] sm:$0xff]
      %v219 = vld [vmem:[#allocation5 + $0x70] sm:$0xff]
      %v220 = vld [vmem:[#allocation5 + $0x78] sm:$0xff]
      %v221 = vld [vmem:[#allocation5 + $0x80] sm:$0xff]
      %v222 = vld [vmem:[#allocation5 + $0x88] sm:$0xff]
      %v223 = vld [vmem:[#allocation5 + $0x90] sm:$0xff]
      %v224 = vld [vmem:[#allocation5 + $0x98] sm:$0xff]
      %v225 = vld [vmem:[#allocation5 + $0xa0] sm:$0xff]
      %v226 = vld [vmem:[#allocation5 + $0xa8] sm:$0xff]
      %v227 = vld [vmem:[#allocation5 + $0xb0] sm:$0xff]
      %v228 = vld [vmem:[#allocation5 + $0xb8] sm:$0xff]
      %v229 = vld [vmem:[#allocation5 + $0xc0] sm:$0xff]
      %v230 = vld [vmem:[#allocation5 + $0xc8] sm:$0xff]
      %v231 = vld [vmem:[#allocation5 + $0xd0] sm:$0xff]
      %v232 = vld [vmem:[#allocation5 + $0xd8] sm:$0xff]
      %v233 = vld [vmem:[#allocation5 + $0xe0] sm:$0xff]
      %v234 = vld [vmem:[#allocation5 + $0xe8] sm:$0xff]
      %v235 = vld [vmem:[#allocation5 + $0xf0] sm:$0xff]
      %v236 = vld [vmem:[#allocation5 + $0xf8] sm:$0xff]
      %v237 = vld [vmem:[#allocation5 + $0x100] sm:$0xff]
      %v238 = vld [vmem:[#allocation5 + $0x108] sm:$0xff]
      %v239 = vld [vmem:[#allocation5 + $0x110] sm:$0xff]
      %v240 = vld [vmem:[#allocation5 + $0x118] sm:$0xff]
      %v241 = vld [vmem:[#allocation5 + $0x120] sm:$0xff]
      %v242 = vld [vmem:[#allocation5 + $0x128] sm:$0xff]
      %v243 = vld [vmem:[#allocation5 + $0x130] sm:$0xff]
      %v244 = vld [vmem:[#allocation5 + $0x138] sm:$0xff]
      %v245 = vld [vmem:[#allocation5 + $0x140] sm:$0xff]
      %v246 = vld [vmem:[#allocation5 + $0x148] sm:$0xff]
      %v247 = vld [vmem:[#allocation5 + $0x150] sm:$0xff]
      %v248 = vld [vmem:[#allocation5 + $0x158] sm:$0xff]
      %v249 = vld [vmem:[#allocation5 + $0x160] sm:$0xff]
      %v250 = vld [vmem:[#allocation5 + $0x168] sm:$0xff]
      %v251 = vld [vmem:[#allocation5 + $0x170] sm:$0xff]
      %v252 = vld [vmem:[#allocation5 + $0x178] sm:$0xff]
      %v253 = vld [vmem:[#allocation5 + $0x180] sm:$0xff]
      %v254 = vld [vmem:[#allocation5 + $0x188] sm:$0xff]
      %v255 = vld [vmem:[#allocation5 + $0x190] sm:$0xff]
      %v256 = vld [vmem:[#allocation5 + $0x198] sm:$0xff]
      %v257 = vld [vmem:[#allocation5 + $0x1a0] sm:$0xff]
      %v258 = vld [vmem:[#allocation5 + $0x1a8] sm:$0xff]
      %v259 = vld [vmem:[#allocation5 + $0x1b0] sm:$0xff]
      %v260 = vld [vmem:[#allocation5 + $0x1b8] sm:$0xff]
      %v261 = vld [vmem:[#allocation5 + $0x1c0] sm:$0xff]
      %v262 = vld [vmem:[#allocation5 + $0x1c8] sm:$0xff]
      %v263 = vld [vmem:[#allocation5 + $0x1d0] sm:$0xff]
      %v264 = vld [vmem:[#allocation5 + $0x1d8] sm:$0xff]
      %v265 = vld [vmem:[#allocation5 + $0x1e0] sm:$0xff]
      %v266 = vld [vmem:[#allocation5 + $0x1e8] sm:$0xff]
      %v267 = vld [vmem:[#allocation5 + $0x1f0] sm:$0xff]
      %v268 = vld [vmem:[#allocation5 + $0x1f8] sm:$0xff]
      %v269 = vld [vmem:[#allocation8] sm:$0xff]
      %v270 = vld [vmem:[#allocation8 + $0x8] sm:$0xff]
      %v271 = vld [vmem:[#allocation8 + $0x10] sm:$0xff]
      %v272 = vld [vmem:[#allocation8 + $0x18] sm:$0xff]
      %v273 = vld [vmem:[#allocation8 + $0x20] sm:$0xff]
      %v274 = vld [vmem:[#allocation8 + $0x28] sm:$0xff]
      %v275 = vld [vmem:[#allocation8 + $0x30] sm:$0xff]
      %v276 = vld [vmem:[#allocation8 + $0x38] sm:$0xff]
      %v277 = vld [vmem:[#allocation8 + $0x40] sm:$0xff]
      %v278 = vld [vmem:[#allocation8 + $0x48] sm:$0xff]
      %v279 = vld [vmem:[#allocation8 + $0x50] sm:$0xff]
      %v280 = vld [vmem:[#allocation8 + $0x58] sm:$0xff]
      %v281 = vld [vmem:[#allocation8 + $0x60] sm:$0xff]
      %v282 = vld [vmem:[#allocation8 + $0x68] sm:$0xff]
      %v283 = vld [vmem:[#allocation8 + $0x70] sm:$0xff]
      %v284 = vld [vmem:[#allocation8 + $0x78] sm:$0xff]
      %v285 = vld [vmem:[#allocation8 + $0x80] sm:$0xff]
      %v286 = vld [vmem:[#allocation8 + $0x88] sm:$0xff]
      %v287 = vld [vmem:[#allocation8 + $0x90] sm:$0xff]
      %v288 = vld [vmem:[#allocation8 + $0x98] sm:$0xff]
      %v289 = vld [vmem:[#allocation8 + $0xa0] sm:$0xff]
      %v290 = vld [vmem:[#allocation8 + $0xa8] sm:$0xff]
      %v291 = vld [vmem:[#allocation8 + $0xb0] sm:$0xff]
      %v292 = vld [vmem:[#allocation8 + $0xb8] sm:$0xff]
      %v293 = vld [vmem:[#allocation8 + $0xc0] sm:$0xff]
      %v294 = vld [vmem:[#allocation8 + $0xc8] sm:$0xff]
      %v295 = vld [vmem:[#allocation8 + $0xd0] sm:$0xff]
      %v296 = vld [vmem:[#allocation8 + $0xd8] sm:$0xff]
      %v297 = vld [vmem:[#allocation8 + $0xe0] sm:$0xff]
      %v298 = vld [vmem:[#allocation8 + $0xe8] sm:$0xff]
      %v299 = vld [vmem:[#allocation8 + $0xf0] sm:$0xff]
      %v300 = vld [vmem:[#allocation8 + $0xf8] sm:$0xff]
      %v301 = vld [vmem:[#allocation8 + $0x100] sm:$0xff]
      %v302 = vld [vmem:[#allocation8 + $0x108] sm:$0xff]
      %v303 = vld [vmem:[#allocation8 + $0x110] sm:$0xff]
      %v304 = vld [vmem:[#allocation8 + $0x118] sm:$0xff]
      %v305 = vld [vmem:[#allocation8 + $0x120] sm:$0xff]
      %v306 = vld [vmem:[#allocation8 + $0x128] sm:$0xff]
      %v307 = vld [vmem:[#allocation8 + $0x130] sm:$0xff]
      %v308 = vld [vmem:[#allocation8 + $0x138] sm:$0xff]
      %v309 = vld [vmem:[#allocation8 + $0x140] sm:$0xff]
      %v310 = vld [vmem:[#allocation8 + $0x148] sm:$0xff]
      %v311 = vld [vmem:[#allocation8 + $0x150] sm:$0xff]
      %v312 = vld [vmem:[#allocation8 + $0x158] sm:$0xff]
      %v313 = vld [vmem:[#allocation8 + $0x160] sm:$0xff]
      %v314 = vld [vmem:[#allocation8 + $0x168] sm:$0xff]
      %v315 = vld [vmem:[#allocation8 + $0x170] sm:$0xff]
      %v316 = vld [vmem:[#allocation8 + $0x178] sm:$0xff]
      %v317 = vld [vmem:[#allocation8 + $0x180] sm:$0xff]
      %v318 = vld [vmem:[#allocation8 + $0x188] sm:$0xff]
      %v319 = vld [vmem:[#allocation8 + $0x190] sm:$0xff]
      %v320 = vld [vmem:[#allocation8 + $0x198] sm:$0xff]
      %v321 = vld [vmem:[#allocation8 + $0x1a0] sm:$0xff]
      %v322 = vld [vmem:[#allocation8 + $0x1a8] sm:$0xff]
      %v323 = vld [vmem:[#allocation8 + $0x1b0] sm:$0xff]
      %v324 = vld [vmem:[#allocation8 + $0x1b8] sm:$0xff]
      %v325 = vld [vmem:[#allocation8 + $0x1c0] sm:$0xff]
      %v326 = vld [vmem:[#allocation8 + $0x1c8] sm:$0xff]
      %v327 = vld [vmem:[#allocation8 + $0x1d0] sm:$0xff]
      %v328 = vld [vmem:[#allocation8 + $0x1d8] sm:$0xff]
      %v329 = vld [vmem:[#allocation8 + $0x1e0] sm:$0xff]
      %v330 = vld [vmem:[#allocation8 + $0x1e8] sm:$0xff]
      %v331 = vld [vmem:[#allocation8 + $0x1f0] sm:$0xff]
      %v332 = vld [vmem:[#allocation8 + $0x1f8] sm:$0xff]
      %v335 = vunpack.c.l.s4 1983009808
      %v336 = vunpack.c.0.s8 %v335
      %v337 = vlaneseq
      %v338 = vshrl.u32 %v337, 7
      %v339 = vsub.s32 %v336, %v338
      %v340 = vrot.slane %v204, %v339
      %v341 = vcombine.high %v340, %v340
      %v344 = vand.u32 %v300, 4294901760
      %345 = vmatprep.subr.mxu0 %v344
      %v346 = vand.u32 %v299, 4294901760
      %347 = vmatpush1.msra.mxu0 %v346
      %v348 = vand.u32 %v298, 4294901760
      %349 = vmatprep.subr.mxu0 %v348
      %v350 = vand.u32 %v297, 4294901760
      %351 = vmatpush1.msra.mxu0 %v350
      %v352 = vand.u32 %v296, 4294901760
      %353 = vmatprep.subr.mxu0 %v352
      %v354 = vand.u32 %v295, 4294901760
      %355 = vmatpush1.msra.mxu0 %v354
      %v356 = vand.u32 %v294, 4294901760
      %357 = vmatprep.subr.mxu0 %v356
      %v358 = vand.u32 %v293, 4294901760
      %359 = vmatpush1.msra.mxu0 %v358
      %v360 = vand.u32 %v292, 4294901760
      %361 = vmatprep.subr.mxu0 %v360
      %v362 = vand.u32 %v291, 4294901760
      %363 = vmatpush1.msra.mxu0 %v362
      %v364 = vand.u32 %v290, 4294901760
      %365 = vmatprep.subr.mxu0 %v364
      %v366 = vand.u32 %v289, 4294901760
      %367 = vmatpush1.msra.mxu0 %v366
      %v368 = vand.u32 %v288, 4294901760
      %369 = vmatprep.subr.mxu0 %v368
      %v370 = vand.u32 %v287, 4294901760
      %371 = vmatpush1.msra.mxu0 %v370
      %v372 = vand.u32 %v286, 4294901760
      %373 = vmatprep.subr.mxu0 %v372
      %v374 = vand.u32 %v285, 4294901760
      %375 = vmatpush1.msra.mxu0 %v374
      %v376 = vand.u32 %v284, 4294901760
      %377 = vmatprep.subr.mxu0 %v376
      %v378 = vand.u32 %v283, 4294901760
      %379 = vmatpush1.msra.mxu0 %v378
      %v380 = vand.u32 %v282, 4294901760
      %381 = vmatprep.subr.mxu0 %v380
      %v382 = vand.u32 %v281, 4294901760
      %383 = vmatpush1.msra.mxu0 %v382
      %v384 = vand.u32 %v280, 4294901760
      %385 = vmatprep.subr.mxu0 %v384
      %v386 = vand.u32 %v279, 4294901760
      %387 = vmatpush1.msra.mxu0 %v386
      %v388 = vand.u32 %v278, 4294901760
      %389 = vmatprep.subr.mxu0 %v388
      %v390 = vand.u32 %v277, 4294901760
      %391 = vmatpush1.msra.mxu0 %v390
      %v392 = vand.u32 %v276, 4294901760
      %393 = vmatprep.subr.mxu0 %v392
      %v394 = vand.u32 %v275, 4294901760
      %395 = vmatpush1.msra.mxu0 %v394
      %v396 = vand.u32 %v274, 4294901760
      %397 = vmatprep.subr.mxu0 %v396
      %v398 = vand.u32 %v273, 4294901760
      %399 = vmatpush1.msra.mxu0 %v398
      %v400 = vand.u32 %v272, 4294901760
      %401 = vmatprep.subr.mxu0 %v400
      %v402 = vand.u32 %v271, 4294901760
      %403 = vmatpush1.msra.mxu0 %v402
      %v404 = vand.u32 %v270, 4294901760
      %405 = vmatprep.subr.mxu0 %v404
      %v406 = vand.u32 %v269, 4294901760
      %407 = vmatpush1.msra.mxu0 %v406
      %v408 = vand.u32 %v332, 4294901760
      %409 = vmatprep.subr.mxu0 %v408
      %v410 = vand.u32 %v331, 4294901760
      %411 = vmatpush2.msra.mxu0 %v410
      %v412 = vand.u32 %v330, 4294901760
      %413 = vmatprep.subr.mxu0 %v412
      %v414 = vand.u32 %v329, 4294901760
      %415 = vmatpush2.msra.mxu0 %v414
      %v416 = vand.u32 %v328, 4294901760
      %417 = vmatprep.subr.mxu0 %v416
      %v418 = vand.u32 %v327, 4294901760
      %419 = vmatpush2.msra.mxu0 %v418
      %v420 = vand.u32 %v326, 4294901760
      %421 = vmatprep.subr.mxu0 %v420
      %v422 = vand.u32 %v325, 4294901760
      %423 = vmatpush2.msra.mxu0 %v422
      %v424 = vand.u32 %v324, 4294901760
      %425 = vmatprep.subr.mxu0 %v424
      %v426 = vand.u32 %v323, 4294901760
      %427 = vmatpush2.msra.mxu0 %v426
      %v428 = vand.u32 %v322, 4294901760
      %429 = vmatprep.subr.mxu0 %v428
      %v430 = vand.u32 %v321, 4294901760
      %431 = vmatpush2.msra.mxu0 %v430
      %v432 = vand.u32 %v320, 4294901760
      %433 = vmatprep.subr.mxu0 %v432
      %v434 = vand.u32 %v319, 4294901760
      %435 = vmatpush2.msra.mxu0 %v434
      %v436 = vand.u32 %v318, 4294901760
      %437 = vmatprep.subr.mxu0 %v436
      %v438 = vand.u32 %v317, 4294901760
      %439 = vmatpush2.msra.mxu0 %v438
      %v440 = vand.u32 %v316, 4294901760
      %441 = vmatprep.subr.mxu0 %v440
      %v442 = vand.u32 %v315, 4294901760
      %443 = vmatpush2.msra.mxu0 %v442
      %v444 = vand.u32 %v314, 4294901760
      %445 = vmatprep.subr.mxu0 %v444
      %v446 = vand.u32 %v313, 4294901760
      %447 = vmatpush2.msra.mxu0 %v446
      %v448 = vand.u32 %v312, 4294901760
      %449 = vmatprep.subr.mxu0 %v448
      %v450 = vand.u32 %v311, 4294901760
      %451 = vmatpush2.msra.mxu0 %v450
      %v452 = vand.u32 %v310, 4294901760
      %453 = vmatprep.subr.mxu0 %v452
      %v454 = vand.u32 %v309, 4294901760
      %455 = vmatpush2.msra.mxu0 %v454
      %v456 = vand.u32 %v308, 4294901760
      %457 = vmatprep.subr.mxu0 %v456
      %v458 = vand.u32 %v307, 4294901760
      %459 = vmatpush2.msra.mxu0 %v458
      %v460 = vand.u32 %v306, 4294901760
      %461 = vmatprep.subr.mxu0 %v460
      %v462 = vand.u32 %v305, 4294901760
      %463 = vmatpush2.msra.mxu0 %v462
      %v464 = vand.u32 %v304, 4294901760
      %465 = vmatprep.subr.mxu0 %v464
      %v466 = vand.u32 %v303, 4294901760
      %467 = vmatpush2.msra.mxu0 %v466
      %v468 = vand.u32 %v302, 4294901760
      %469 = vmatprep.subr.mxu0 %v468
      %v470 = vand.u32 %v301, 4294901760
      %471 = vmatpush2.msra.mxu0 %v470
      %v472 = vand.u32 %v341, 4294901760
      %v473 = vsub.f32 %v341, %v472
      %v474 = vand.u32 %v473, 4294901760
      %v475 = vsub.f32 %v473, %v474
      %v476 = vand.u32 %v475, 4294901760
      %477 = vmatprep.mubr.f32.mxu0 %v476
      %v478 = vand.u32 %v340, 4294901760
      %v479 = vsub.f32 %v340, %v478
      %v480 = vand.u32 %v479, 4294901760
      %v481 = vsub.f32 %v479, %v480
      %v482 = vand.u32 %v481, 4294901760
      %483 = vmatmul.mubr.f32.gmra.mxu0 %v482
      %v484 = vpop.f32.mrf.mxu0
      %v485 = vadd.f32 0.0, %v484
      %v486 = vpop.f32.mrf.mxu0
      %v487 = vadd.f32 0.0, %v486
      %488 = vdwg.mxu0
      %v489 = vand.u32 %v300, 4294901760
      %v490 = vsub.f32 %v300, %v489
      %v491 = vand.u32 %v490, 4294901760
      %v492 = vsub.f32 %v490, %v491
      %v493 = vand.u32 %v492, 4294901760
      %494 = vmatprep.subr.mxu0 %v493
      %v495 = vand.u32 %v299, 4294901760
      %v496 = vsub.f32 %v299, %v495
      %v497 = vand.u32 %v496, 4294901760
      %v498 = vsub.f32 %v496, %v497
      %v499 = vand.u32 %v498, 4294901760
      %500 = vmatpush1.msra.mxu0 %v499
      %v501 = vand.u32 %v298, 4294901760
      %v502 = vsub.f32 %v298, %v501
      %v503 = vand.u32 %v502, 4294901760
      %v504 = vsub.f32 %v502, %v503
      %v505 = vand.u32 %v504, 4294901760
      %506 = vmatprep.subr.mxu0 %v505
      %v507 = vand.u32 %v297, 4294901760
      %v508 = vsub.f32 %v297, %v507
      %v509 = vand.u32 %v508, 4294901760
      %v510 = vsub.f32 %v508, %v509
      %v511 = vand.u32 %v510, 4294901760
      %512 = vmatpush1.msra.mxu0 %v511
      %v513 = vand.u32 %v296, 4294901760
      %v514 = vsub.f32 %v296, %v513
      %v515 = vand.u32 %v514, 4294901760
      %v516 = vsub.f32 %v514, %v515
      %v517 = vand.u32 %v516, 4294901760
      %518 = vmatprep.subr.mxu0 %v517
      %v519 = vand.u32 %v295, 4294901760
      %v520 = vsub.f32 %v295, %v519
      %v521 = vand.u32 %v520, 4294901760
      %v522 = vsub.f32 %v520, %v521
      %v523 = vand.u32 %v522, 4294901760
      %524 = vmatpush1.msra.mxu0 %v523
      %v525 = vand.u32 %v294, 4294901760
      %v526 = vsub.f32 %v294, %v525
      %v527 = vand.u32 %v526, 4294901760
      %v528 = vsub.f32 %v526, %v527
      %v529 = vand.u32 %v528, 4294901760
      %530 = vmatprep.subr.mxu0 %v529
      %v531 = vand.u32 %v293, 4294901760
      %v532 = vsub.f32 %v293, %v531
      %v533 = vand.u32 %v532, 4294901760
      %v534 = vsub.f32 %v532, %v533
      %v535 = vand.u32 %v534, 4294901760
      %536 = vmatpush1.msra.mxu0 %v535
      %v537 = vand.u32 %v292, 4294901760
      %v538 = vsub.f32 %v292, %v537
      %v539 = vand.u32 %v538, 4294901760
      %v540 = vsub.f32 %v538, %v539
      %v541 = vand.u32 %v540, 4294901760
      %542 = vmatprep.subr.mxu0 %v541
      %v543 = vand.u32 %v291, 4294901760
      %v544 = vsub.f32 %v291, %v543
      %v545 = vand.u32 %v544, 4294901760
      %v546 = vsub.f32 %v544, %v545
      %v547 = vand.u32 %v546, 4294901760
      %548 = vmatpush1.msra.mxu0 %v547
      %v549 = vand.u32 %v290, 4294901760
      %v550 = vsub.f32 %v290, %v549
      %v551 = vand.u32 %v550, 4294901760
      %v552 = vsub.f32 %v550, %v551
      %v553 = vand.u32 %v552, 4294901760
      %554 = vmatprep.subr.mxu0 %v553
      %v555 = vand.u32 %v289, 4294901760
      %v556 = vsub.f32 %v289, %v555
      %v557 = vand.u32 %v556, 4294901760
      %v558 = vsub.f32 %v556, %v557
      %v559 = vand.u32 %v558, 4294901760
      %560 = vmatpush1.msra.mxu0 %v559
      %v561 = vand.u32 %v288, 4294901760
      %v562 = vsub.f32 %v288, %v561
      %v563 = vand.u32 %v562, 4294901760
      %v564 = vsub.f32 %v562, %v563
      %v565 = vand.u32 %v564, 4294901760
      %566 = vmatprep.subr.mxu0 %v565
      %v567 = vand.u32 %v287, 4294901760
      %v568 = vsub.f32 %v287, %v567
      %v569 = vand.u32 %v568, 4294901760
      %v570 = vsub.f32 %v568, %v569
      %v571 = vand.u32 %v570, 4294901760
      %572 = vmatpush1.msra.mxu0 %v571
      %v573 = vand.u32 %v286, 4294901760
      %v574 = vsub.f32 %v286, %v573
      %v575 = vand.u32 %v574, 4294901760
      %v576 = vsub.f32 %v574, %v575
      %v577 = vand.u32 %v576, 4294901760
      %578 = vmatprep.subr.mxu0 %v577
      %v579 = vand.u32 %v285, 4294901760
      %v580 = vsub.f32 %v285, %v579
      %v581 = vand.u32 %v580, 4294901760
      %v582 = vsub.f32 %v580, %v581
      %v583 = vand.u32 %v582, 4294901760
      %584 = vmatpush1.msra.mxu0 %v583
      %v585 = vand.u32 %v284, 4294901760
      %v586 = vsub.f32 %v284, %v585
      %v587 = vand.u32 %v586, 4294901760
      %v588 = vsub.f32 %v586, %v587
      %v589 = vand.u32 %v588, 4294901760
      %590 = vmatprep.subr.mxu0 %v589
      %v591 = vand.u32 %v283, 4294901760
      %v592 = vsub.f32 %v283, %v591
      %v593 = vand.u32 %v592, 4294901760
      %v594 = vsub.f32 %v592, %v593
      %v595 = vand.u32 %v594, 4294901760
      %596 = vmatpush1.msra.mxu0 %v595
      %v597 = vand.u32 %v282, 4294901760
      %v598 = vsub.f32 %v282, %v597
      %v599 = vand.u32 %v598, 4294901760
      %v600 = vsub.f32 %v598, %v599
      %v601 = vand.u32 %v600, 4294901760
      %602 = vmatprep.subr.mxu0 %v601
      %v603 = vand.u32 %v281, 4294901760
      %v604 = vsub.f32 %v281, %v603
      %v605 = vand.u32 %v604, 4294901760
      %v606 = vsub.f32 %v604, %v605
      %v607 = vand.u32 %v606, 4294901760
      %608 = vmatpush1.msra.mxu0 %v607
      %v609 = vand.u32 %v280, 4294901760
      %v610 = vsub.f32 %v280, %v609
      %v611 = vand.u32 %v610, 4294901760
      %v612 = vsub.f32 %v610, %v611
      %v613 = vand.u32 %v612, 4294901760
      %614 = vmatprep.subr.mxu0 %v613
      %v615 = vand.u32 %v279, 4294901760
      %v616 = vsub.f32 %v279, %v615
      %v617 = vand.u32 %v616, 4294901760
      %v618 = vsub.f32 %v616, %v617
      %v619 = vand.u32 %v618, 4294901760
      %620 = vmatpush1.msra.mxu0 %v619
      %v621 = vand.u32 %v278, 4294901760
      %v622 = vsub.f32 %v278, %v621
      %v623 = vand.u32 %v622, 4294901760
      %v624 = vsub.f32 %v622, %v623
      %v625 = vand.u32 %v624, 4294901760
      %626 = vmatprep.subr.mxu0 %v625
      %v627 = vand.u32 %v277, 4294901760
      %v628 = vsub.f32 %v277, %v627
      %v629 = vand.u32 %v628, 4294901760
      %v630 = vsub.f32 %v628, %v629
      %v631 = vand.u32 %v630, 4294901760
      %632 = vmatpush1.msra.mxu0 %v631
      %v633 = vand.u32 %v276, 4294901760
      %v634 = vsub.f32 %v276, %v633
      %v635 = vand.u32 %v634, 4294901760
      %v636 = vsub.f32 %v634, %v635
      %v637 = vand.u32 %v636, 4294901760
      %638 = vmatprep.subr.mxu0 %v637
      %v639 = vand.u32 %v275, 4294901760
      %v640 = vsub.f32 %v275, %v639
      %v641 = vand.u32 %v640, 4294901760
      %v642 = vsub.f32 %v640, %v641
      %v643 = vand.u32 %v642, 4294901760
      %644 = vmatpush1.msra.mxu0 %v643
      %v645 = vand.u32 %v274, 4294901760
      %v646 = vsub.f32 %v274, %v645
      %v647 = vand.u32 %v646, 4294901760
      %v648 = vsub.f32 %v646, %v647
      %v649 = vand.u32 %v648, 4294901760
      %650 = vmatprep.subr.mxu0 %v649
      %v651 = vand.u32 %v273, 4294901760
      %v652 = vsub.f32 %v273, %v651
      %v653 = vand.u32 %v652, 4294901760
      %v654 = vsub.f32 %v652, %v653
      %v655 = vand.u32 %v654, 4294901760
      %656 = vmatpush1.msra.mxu0 %v655
      %v657 = vand.u32 %v272, 4294901760
      %v658 = vsub.f32 %v272, %v657
      %v659 = vand.u32 %v658, 4294901760
      %v660 = vsub.f32 %v658, %v659
      %v661 = vand.u32 %v660, 4294901760
      %662 = vmatprep.subr.mxu0 %v661
      %v663 = vand.u32 %v271, 4294901760
      %v664 = vsub.f32 %v271, %v663
      %v665 = vand.u32 %v664, 4294901760
      %v666 = vsub.f32 %v664, %v665
      %v667 = vand.u32 %v666, 4294901760
      %668 = vmatpush1.msra.mxu0 %v667
      %v669 = vand.u32 %v270, 4294901760
      %v670 = vsub.f32 %v270, %v669
      %v671 = vand.u32 %v670, 4294901760
      %v672 = vsub.f32 %v670, %v671
      %v673 = vand.u32 %v672, 4294901760
      %674 = vmatprep.subr.mxu0 %v673
      %v675 = vand.u32 %v269, 4294901760
      %v676 = vsub.f32 %v269, %v675
      %v677 = vand.u32 %v676, 4294901760
      %v678 = vsub.f32 %v676, %v677
      %v679 = vand.u32 %v678, 4294901760
      %680 = vmatpush1.msra.mxu0 %v679
      %v681 = vand.u32 %v332, 4294901760
      %v682 = vsub.f32 %v332, %v681
      %v683 = vand.u32 %v682, 4294901760
      %v684 = vsub.f32 %v682, %v683
      %v685 = vand.u32 %v684, 4294901760
      %686 = vmatprep.subr.mxu0 %v685
      %v687 = vand.u32 %v331, 4294901760
      %v688 = vsub.f32 %v331, %v687
      %v689 = vand.u32 %v688, 4294901760
      %v690 = vsub.f32 %v688, %v689
      %v691 = vand.u32 %v690, 4294901760
      %692 = vmatpush2.msra.mxu0 %v691
      %v693 = vand.u32 %v330, 4294901760
      %v694 = vsub.f32 %v330, %v693
      %v695 = vand.u32 %v694, 4294901760
      %v696 = vsub.f32 %v694, %v695
      %v697 = vand.u32 %v696, 4294901760
      %698 = vmatprep.subr.mxu0 %v697
      %v699 = vand.u32 %v329, 4294901760
      %v700 = vsub.f32 %v329, %v699
      %v701 = vand.u32 %v700, 4294901760
      %v702 = vsub.f32 %v700, %v701
      %v703 = vand.u32 %v702, 4294901760
      %704 = vmatpush2.msra.mxu0 %v703
      %v705 = vand.u32 %v328, 4294901760
      %v706 = vsub.f32 %v328, %v705
      %v707 = vand.u32 %v706, 4294901760
      %v708 = vsub.f32 %v706, %v707
      %v709 = vand.u32 %v708, 4294901760
      %710 = vmatprep.subr.mxu0 %v709
      %v711 = vand.u32 %v327, 4294901760
      %v712 = vsub.f32 %v327, %v711
      %v713 = vand.u32 %v712, 4294901760
      %v714 = vsub.f32 %v712, %v713
      %v715 = vand.u32 %v714, 4294901760
      %716 = vmatpush2.msra.mxu0 %v715
      %v717 = vand.u32 %v326, 4294901760
      %v718 = vsub.f32 %v326, %v717
      %v719 = vand.u32 %v718, 4294901760
      %v720 = vsub.f32 %v718, %v719
      %v721 = vand.u32 %v720, 4294901760
      %722 = vmatprep.subr.mxu0 %v721
      %v723 = vand.u32 %v325, 4294901760
      %v724 = vsub.f32 %v325, %v723
      %v725 = vand.u32 %v724, 4294901760
      %v726 = vsub.f32 %v724, %v725
      %v727 = vand.u32 %v726, 4294901760
      %728 = vmatpush2.msra.mxu0 %v727
      %v729 = vand.u32 %v324, 4294901760
      %v730 = vsub.f32 %v324, %v729
      %v731 = vand.u32 %v730, 4294901760
      %v732 = vsub.f32 %v730, %v731
      %v733 = vand.u32 %v732, 4294901760
      %734 = vmatprep.subr.mxu0 %v733
      %v735 = vand.u32 %v323, 4294901760
      %v736 = vsub.f32 %v323, %v735
      %v737 = vand.u32 %v736, 4294901760
      %v738 = vsub.f32 %v736, %v737
      %v739 = vand.u32 %v738, 4294901760
      %740 = vmatpush2.msra.mxu0 %v739
      %v741 = vand.u32 %v322, 4294901760
      %v742 = vsub.f32 %v322, %v741
      %v743 = vand.u32 %v742, 4294901760
      %v744 = vsub.f32 %v742, %v743
      %v745 = vand.u32 %v744, 4294901760
      %746 = vmatprep.subr.mxu0 %v745
      %v747 = vand.u32 %v321, 4294901760
      %v748 = vsub.f32 %v321, %v747
      %v749 = vand.u32 %v748, 4294901760
      %v750 = vsub.f32 %v748, %v749
      %v751 = vand.u32 %v750, 4294901760
      %752 = vmatpush2.msra.mxu0 %v751
      %v753 = vand.u32 %v320, 4294901760
      %v754 = vsub.f32 %v320, %v753
      %v755 = vand.u32 %v754, 4294901760
      %v756 = vsub.f32 %v754, %v755
      %v757 = vand.u32 %v756, 4294901760
      %758 = vmatprep.subr.mxu0 %v757
      %v759 = vand.u32 %v319, 4294901760
      %v760 = vsub.f32 %v319, %v759
      %v761 = vand.u32 %v760, 4294901760
      %v762 = vsub.f32 %v760, %v761
      %v763 = vand.u32 %v762, 4294901760
      %764 = vmatpush2.msra.mxu0 %v763
      %v765 = vand.u32 %v318, 4294901760
      %v766 = vsub.f32 %v318, %v765
      %v767 = vand.u32 %v766, 4294901760
      %v768 = vsub.f32 %v766, %v767
      %v769 = vand.u32 %v768, 4294901760
      %770 = vmatprep.subr.mxu0 %v769
      %v771 = vand.u32 %v317, 4294901760
      %v772 = vsub.f32 %v317, %v771
      %v773 = vand.u32 %v772, 4294901760
      %v774 = vsub.f32 %v772, %v773
      %v775 = vand.u32 %v774, 4294901760
      %776 = vmatpush2.msra.mxu0 %v775
      %v777 = vand.u32 %v316, 4294901760
      %v778 = vsub.f32 %v316, %v777
      %v779 = vand.u32 %v778, 4294901760
      %v780 = vsub.f32 %v778, %v779
      %v781 = vand.u32 %v780, 4294901760
      %782 = vmatprep.subr.mxu0 %v781
      %v783 = vand.u32 %v315, 4294901760
      %v784 = vsub.f32 %v315, %v783
      %v785 = vand.u32 %v784, 4294901760
      %v786 = vsub.f32 %v784, %v785
      %v787 = vand.u32 %v786, 4294901760
      %788 = vmatpush2.msra.mxu0 %v787
      %v789 = vand.u32 %v314, 4294901760
      %v790 = vsub.f32 %v314, %v789
      %v791 = vand.u32 %v790, 4294901760
      %v792 = vsub.f32 %v790, %v791
      %v793 = vand.u32 %v792, 4294901760
      %794 = vmatprep.subr.mxu0 %v793
      %v795 = vand.u32 %v313, 4294901760
      %v796 = vsub.f32 %v313, %v795
      %v797 = vand.u32 %v796, 4294901760
      %v798 = vsub.f32 %v796, %v797
      %v799 = vand.u32 %v798, 4294901760
      %800 = vmatpush2.msra.mxu0 %v799
      %v801 = vand.u32 %v312, 4294901760
      %v802 = vsub.f32 %v312, %v801
      %v803 = vand.u32 %v802, 4294901760
      %v804 = vsub.f32 %v802, %v803
      %v805 = vand.u32 %v804, 4294901760
      %806 = vmatprep.subr.mxu0 %v805
      %v807 = vand.u32 %v311, 4294901760
      %v808 = vsub.f32 %v311, %v807
      %v809 = vand.u32 %v808, 4294901760
      %v810 = vsub.f32 %v808, %v809
      %v811 = vand.u32 %v810, 4294901760
      %812 = vmatpush2.msra.mxu0 %v811
      %v813 = vand.u32 %v310, 4294901760
      %v814 = vsub.f32 %v310, %v813
      %v815 = vand.u32 %v814, 4294901760
      %v816 = vsub.f32 %v814, %v815
      %v817 = vand.u32 %v816, 4294901760
      %818 = vmatprep.subr.mxu0 %v817
      %v819 = vand.u32 %v309, 4294901760
      %v820 = vsub.f32 %v309, %v819
      %v821 = vand.u32 %v820, 4294901760
      %v822 = vsub.f32 %v820, %v821
      %v823 = vand.u32 %v822, 4294901760
      %824 = vmatpush2.msra.mxu0 %v823
      %v825 = vand.u32 %v308, 4294901760
      %v826 = vsub.f32 %v308, %v825
      %v827 = vand.u32 %v826, 4294901760
      %v828 = vsub.f32 %v826, %v827
      %v829 = vand.u32 %v828, 4294901760
      %830 = vmatprep.subr.mxu0 %v829
      %v831 = vand.u32 %v307, 4294901760
      %v832 = vsub.f32 %v307, %v831
      %v833 = vand.u32 %v832, 4294901760
      %v834 = vsub.f32 %v832, %v833
      %v835 = vand.u32 %v834, 4294901760
      %836 = vmatpush2.msra.mxu0 %v835
      %v837 = vand.u32 %v306, 4294901760
      %v838 = vsub.f32 %v306, %v837
      %v839 = vand.u32 %v838, 4294901760
      %v840 = vsub.f32 %v838, %v839
      %v841 = vand.u32 %v840, 4294901760
      %842 = vmatprep.subr.mxu0 %v841
      %v843 = vand.u32 %v305, 4294901760
      %v844 = vsub.f32 %v305, %v843
      %v845 = vand.u32 %v844, 4294901760
      %v846 = vsub.f32 %v844, %v845
      %v847 = vand.u32 %v846, 4294901760
      %848 = vmatpush2.msra.mxu0 %v847
      %v849 = vand.u32 %v304, 4294901760
      %v850 = vsub.f32 %v304, %v849
      %v851 = vand.u32 %v850, 4294901760
      %v852 = vsub.f32 %v850, %v851
      %v853 = vand.u32 %v852, 4294901760
      %854 = vmatprep.subr.mxu0 %v853
      %v855 = vand.u32 %v303, 4294901760
      %v856 = vsub.f32 %v303, %v855
      %v857 = vand.u32 %v856, 4294901760
      %v858 = vsub.f32 %v856, %v857
      %v859 = vand.u32 %v858, 4294901760
      %860 = vmatpush2.msra.mxu0 %v859
      %v861 = vand.u32 %v302, 4294901760
      %v862 = vsub.f32 %v302, %v861
      %v863 = vand.u32 %v862, 4294901760
      %v864 = vsub.f32 %v862, %v863
      %v865 = vand.u32 %v864, 4294901760
      %866 = vmatprep.subr.mxu0 %v865
      %v867 = vand.u32 %v301, 4294901760
      %v868 = vsub.f32 %v301, %v867
      %v869 = vand.u32 %v868, 4294901760
      %v870 = vsub.f32 %v868, %v869
      %v871 = vand.u32 %v870, 4294901760
      %872 = vmatpush2.msra.mxu0 %v871
      %v873 = vand.u32 %v341, 4294901760
      %874 = vmatprep.mubr.f32.mxu0 %v873
      %v875 = vand.u32 %v340, 4294901760
      %876 = vmatmul.mubr.f32.gmra.mxu0 %v875
      %v877 = vpop.f32.mrf.mxu0
      %v878 = vadd.f32 %v485, %v877
      %v879 = vpop.f32.mrf.mxu0
      %v880 = vadd.f32 %v487, %v879
      %881 = vdwg.mxu0
      %v882 = vand.u32 %v300, 4294901760
      %v883 = vsub.f32 %v300, %v882
      %884 = vmatprep.subr.mxu0 %v883
      %v885 = vand.u32 %v299, 4294901760
      %v886 = vsub.f32 %v299, %v885
      %887 = vmatpush1.msra.mxu0 %v886
      %v888 = vand.u32 %v298, 4294901760
      %v889 = vsub.f32 %v298, %v888
      %890 = vmatprep.subr.mxu0 %v889
      %v891 = vand.u32 %v297, 4294901760
      %v892 = vsub.f32 %v297, %v891
      %893 = vmatpush1.msra.mxu0 %v892
      %v894 = vand.u32 %v296, 4294901760
      %v895 = vsub.f32 %v296, %v894
      %896 = vmatprep.subr.mxu0 %v895
      %v897 = vand.u32 %v295, 4294901760
      %v898 = vsub.f32 %v295, %v897
      %899 = vmatpush1.msra.mxu0 %v898
      %v900 = vand.u32 %v294, 4294901760
      %v901 = vsub.f32 %v294, %v900
      %902 = vmatprep.subr.mxu0 %v901
      %v903 = vand.u32 %v293, 4294901760
      %v904 = vsub.f32 %v293, %v903
      %905 = vmatpush1.msra.mxu0 %v904
      %v906 = vand.u32 %v292, 4294901760
      %v907 = vsub.f32 %v292, %v906
      %908 = vmatprep.subr.mxu0 %v907
      %v909 = vand.u32 %v291, 4294901760
      %v910 = vsub.f32 %v291, %v909
      %911 = vmatpush1.msra.mxu0 %v910
      %v912 = vand.u32 %v290, 4294901760
      %v913 = vsub.f32 %v290, %v912
      %914 = vmatprep.subr.mxu0 %v913
      %v915 = vand.u32 %v289, 4294901760
      %v916 = vsub.f32 %v289, %v915
      %917 = vmatpush1.msra.mxu0 %v916
      %v918 = vand.u32 %v288, 4294901760
      %v919 = vsub.f32 %v288, %v918
      %920 = vmatprep.subr.mxu0 %v919
      %v921 = vand.u32 %v287, 4294901760
      %v922 = vsub.f32 %v287, %v921
      %923 = vmatpush1.msra.mxu0 %v922
      %v924 = vand.u32 %v286, 4294901760
      %v925 = vsub.f32 %v286, %v924
      %926 = vmatprep.subr.mxu0 %v925
      %v927 = vand.u32 %v285, 4294901760
      %v928 = vsub.f32 %v285, %v927
      %929 = vmatpush1.msra.mxu0 %v928
      %v930 = vand.u32 %v284, 4294901760
      %v931 = vsub.f32 %v284, %v930
      %932 = vmatprep.subr.mxu0 %v931
      %v933 = vand.u32 %v283, 4294901760
      %v934 = vsub.f32 %v283, %v933
      %935 = vmatpush1.msra.mxu0 %v934
      %v936 = vand.u32 %v282, 4294901760
      %v937 = vsub.f32 %v282, %v936
      %938 = vmatprep.subr.mxu0 %v937
      %v939 = vand.u32 %v281, 4294901760
      %v940 = vsub.f32 %v281, %v939
      %941 = vmatpush1.msra.mxu0 %v940
      %v942 = vand.u32 %v280, 4294901760
      %v943 = vsub.f32 %v280, %v942
      %944 = vmatprep.subr.mxu0 %v943
      %v945 = vand.u32 %v279, 4294901760
      %v946 = vsub.f32 %v279, %v945
      %947 = vmatpush1.msra.mxu0 %v946
      %v948 = vand.u32 %v278, 4294901760
      %v949 = vsub.f32 %v278, %v948
      %950 = vmatprep.subr.mxu0 %v949
      %v951 = vand.u32 %v277, 4294901760
      %v952 = vsub.f32 %v277, %v951
      %953 = vmatpush1.msra.mxu0 %v952
      %v954 = vand.u32 %v276, 4294901760
      %v955 = vsub.f32 %v276, %v954
      %956 = vmatprep.subr.mxu0 %v955
      %v957 = vand.u32 %v275, 4294901760
      %v958 = vsub.f32 %v275, %v957
      %959 = vmatpush1.msra.mxu0 %v958
      %v960 = vand.u32 %v274, 4294901760
      %v961 = vsub.f32 %v274, %v960
      %962 = vmatprep.subr.mxu0 %v961
      %v963 = vand.u32 %v273, 4294901760
      %v964 = vsub.f32 %v273, %v963
      %965 = vmatpush1.msra.mxu0 %v964
      %v966 = vand.u32 %v272, 4294901760
      %v967 = vsub.f32 %v272, %v966
      %968 = vmatprep.subr.mxu0 %v967
      %v969 = vand.u32 %v271, 4294901760
      %v970 = vsub.f32 %v271, %v969
      %971 = vmatpush1.msra.mxu0 %v970
      %v972 = vand.u32 %v270, 4294901760
      %v973 = vsub.f32 %v270, %v972
      %974 = vmatprep.subr.mxu0 %v973
      %v975 = vand.u32 %v269, 4294901760
      %v976 = vsub.f32 %v269, %v975
      %977 = vmatpush1.msra.mxu0 %v976
      %v978 = vand.u32 %v332, 4294901760
      %v979 = vsub.f32 %v332, %v978
      %980 = vmatprep.subr.mxu0 %v979
      %v981 = vand.u32 %v331, 4294901760
      %v982 = vsub.f32 %v331, %v981
      %983 = vmatpush2.msra.mxu0 %v982
      %v984 = vand.u32 %v330, 4294901760
      %v985 = vsub.f32 %v330, %v984
      %986 = vmatprep.subr.mxu0 %v985
      %v987 = vand.u32 %v329, 4294901760
      %v988 = vsub.f32 %v329, %v987
      %989 = vmatpush2.msra.mxu0 %v988
      %v990 = vand.u32 %v328, 4294901760
      %v991 = vsub.f32 %v328, %v990
      %992 = vmatprep.subr.mxu0 %v991
      %v993 = vand.u32 %v327, 4294901760
      %v994 = vsub.f32 %v327, %v993
      %995 = vmatpush2.msra.mxu0 %v994
      %v996 = vand.u32 %v326, 4294901760
      %v997 = vsub.f32 %v326, %v996
      %998 = vmatprep.subr.mxu0 %v997
      %v999 = vand.u32 %v325, 4294901760
      %v1000 = vsub.f32 %v325, %v999
      %1001 = vmatpush2.msra.mxu0 %v1000
      %v1002 = vand.u32 %v324, 4294901760
      %v1003 = vsub.f32 %v324, %v1002
      %1004 = vmatprep.subr.mxu0 %v1003
      %v1005 = vand.u32 %v323, 4294901760
      %v1006 = vsub.f32 %v323, %v1005
      %1007 = vmatpush2.msra.mxu0 %v1006
      %v1008 = vand.u32 %v322, 4294901760
      %v1009 = vsub.f32 %v322, %v1008
      %1010 = vmatprep.subr.mxu0 %v1009
      %v1011 = vand.u32 %v321, 4294901760
      %v1012 = vsub.f32 %v321, %v1011
      %1013 = vmatpush2.msra.mxu0 %v1012
      %v1014 = vand.u32 %v320, 4294901760
      %v1015 = vsub.f32 %v320, %v1014
      %1016 = vmatprep.subr.mxu0 %v1015
      %v1017 = vand.u32 %v319, 4294901760
      %v1018 = vsub.f32 %v319, %v1017
      %1019 = vmatpush2.msra.mxu0 %v1018
      %v1020 = vand.u32 %v318, 4294901760
      %v1021 = vsub.f32 %v318, %v1020
      %1022 = vmatprep.subr.mxu0 %v1021
      %v1023 = vand.u32 %v317, 4294901760
      %v1024 = vsub.f32 %v317, %v1023
      %1025 = vmatpush2.msra.mxu0 %v1024
      %v1026 = vand.u32 %v316, 4294901760
      %v1027 = vsub.f32 %v316, %v1026
      %1028 = vmatprep.subr.mxu0 %v1027
      %v1029 = vand.u32 %v315, 4294901760
      %v1030 = vsub.f32 %v315, %v1029
      %1031 = vmatpush2.msra.mxu0 %v1030
      %v1032 = vand.u32 %v314, 4294901760
      %v1033 = vsub.f32 %v314, %v1032
      %1034 = vmatprep.subr.mxu0 %v1033
      %v1035 = vand.u32 %v313, 4294901760
      %v1036 = vsub.f32 %v313, %v1035
      %1037 = vmatpush2.msra.mxu0 %v1036
      %v1038 = vand.u32 %v312, 4294901760
      %v1039 = vsub.f32 %v312, %v1038
      %1040 = vmatprep.subr.mxu0 %v1039
      %v1041 = vand.u32 %v311, 4294901760
      %v1042 = vsub.f32 %v311, %v1041
      %1043 = vmatpush2.msra.mxu0 %v1042
      %v1044 = vand.u32 %v310, 4294901760
      %v1045 = vsub.f32 %v310, %v1044
      %1046 = vmatprep.subr.mxu0 %v1045
      %v1047 = vand.u32 %v309, 4294901760
      %v1048 = vsub.f32 %v309, %v1047
      %1049 = vmatpush2.msra.mxu0 %v1048
      %v1050 = vand.u32 %v308, 4294901760
      %v1051 = vsub.f32 %v308, %v1050
      %1052 = vmatprep.subr.mxu0 %v1051
      %v1053 = vand.u32 %v307, 4294901760
      %v1054 = vsub.f32 %v307, %v1053
      %1055 = vmatpush2.msra.mxu0 %v1054
      %v1056 = vand.u32 %v306, 4294901760
      %v1057 = vsub.f32 %v306, %v1056
      %1058 = vmatprep.subr.mxu0 %v1057
      %v1059 = vand.u32 %v305, 4294901760
      %v1060 = vsub.f32 %v305, %v1059
      %1061 = vmatpush2.msra.mxu0 %v1060
      %v1062 = vand.u32 %v304, 4294901760
      %v1063 = vsub.f32 %v304, %v1062
      %1064 = vmatprep.subr.mxu0 %v1063
      %v1065 = vand.u32 %v303, 4294901760
      %v1066 = vsub.f32 %v303, %v1065
      %1067 = vmatpush2.msra.mxu0 %v1066
      %v1068 = vand.u32 %v302, 4294901760
      %v1069 = vsub.f32 %v302, %v1068
      %1070 = vmatprep.subr.mxu0 %v1069
      %v1071 = vand.u32 %v301, 4294901760
      %v1072 = vsub.f32 %v301, %v1071
      %1073 = vmatpush2.msra.mxu0 %v1072
      %v1074 = vand.u32 %v341, 4294901760
      %v1075 = vsub.f32 %v341, %v1074
      %1076 = vmatprep.mubr.f32.mxu0 %v1075
      %v1077 = vand.u32 %v340, 4294901760
      %v1078 = vsub.f32 %v340, %v1077
      %1079 = vmatmul.mubr.f32.gmra.mxu0 %v1078
      %v1080 = vpop.f32.mrf.mxu0
      %v1081 = vadd.f32 %v878, %v1080
      %v1082 = vpop.f32.mrf.mxu0
      %v1083 = vadd.f32 %v880, %v1082
      %1084 = vdwg.mxu0
      %v1085 = vand.u32 %v300, 4294901760
      %1086 = vmatprep.subr.mxu0 %v1085
      %v1087 = vand.u32 %v299, 4294901760
      %1088 = vmatpush1.msra.mxu0 %v1087
      %v1089 = vand.u32 %v298, 4294901760
      %1090 = vmatprep.subr.mxu0 %v1089
      %v1091 = vand.u32 %v297, 4294901760
      %1092 = vmatpush1.msra.mxu0 %v1091
      %v1093 = vand.u32 %v296, 4294901760
      %1094 = vmatprep.subr.mxu0 %v1093
      %v1095 = vand.u32 %v295, 4294901760
      %1096 = vmatpush1.msra.mxu0 %v1095
      %v1097 = vand.u32 %v294, 4294901760
      %1098 = vmatprep.subr.mxu0 %v1097
      %v1099 = vand.u32 %v293, 4294901760
      %1100 = vmatpush1.msra.mxu0 %v1099
      %v1101 = vand.u32 %v292, 4294901760
      %1102 = vmatprep.subr.mxu0 %v1101
      %v1103 = vand.u32 %v291, 4294901760
      %1104 = vmatpush1.msra.mxu0 %v1103
      %v1105 = vand.u32 %v290, 4294901760
      %1106 = vmatprep.subr.mxu0 %v1105
      %v1107 = vand.u32 %v289, 4294901760
      %1108 = vmatpush1.msra.mxu0 %v1107
      %v1109 = vand.u32 %v288, 4294901760
      %1110 = vmatprep.subr.mxu0 %v1109
      %v1111 = vand.u32 %v287, 4294901760
      %1112 = vmatpush1.msra.mxu0 %v1111
      %v1113 = vand.u32 %v286, 4294901760
      %1114 = vmatprep.subr.mxu0 %v1113
      %v1115 = vand.u32 %v285, 4294901760
      %1116 = vmatpush1.msra.mxu0 %v1115
      %v1117 = vand.u32 %v284, 4294901760
      %1118 = vmatprep.subr.mxu0 %v1117
      %v1119 = vand.u32 %v283, 4294901760
      %1120 = vmatpush1.msra.mxu0 %v1119
      %v1121 = vand.u32 %v282, 4294901760
      %1122 = vmatprep.subr.mxu0 %v1121
      %v1123 = vand.u32 %v281, 4294901760
      %1124 = vmatpush1.msra.mxu0 %v1123
      %v1125 = vand.u32 %v280, 4294901760
      %1126 = vmatprep.subr.mxu0 %v1125
      %v1127 = vand.u32 %v279, 4294901760
      %1128 = vmatpush1.msra.mxu0 %v1127
      %v1129 = vand.u32 %v278, 4294901760
      %1130 = vmatprep.subr.mxu0 %v1129
      %v1131 = vand.u32 %v277, 4294901760
      %1132 = vmatpush1.msra.mxu0 %v1131
      %v1133 = vand.u32 %v276, 4294901760
      %1134 = vmatprep.subr.mxu0 %v1133
      %v1135 = vand.u32 %v275, 4294901760
      %1136 = vmatpush1.msra.mxu0 %v1135
      %v1137 = vand.u32 %v274, 4294901760
      %1138 = vmatprep.subr.mxu0 %v1137
      %v1139 = vand.u32 %v273, 4294901760
      %1140 = vmatpush1.msra.mxu0 %v1139
      %v1141 = vand.u32 %v272, 4294901760
      %1142 = vmatprep.subr.mxu0 %v1141
      %v1143 = vand.u32 %v271, 4294901760
      %1144 = vmatpush1.msra.mxu0 %v1143
      %v1145 = vand.u32 %v270, 4294901760
      %1146 = vmatprep.subr.mxu0 %v1145
      %v1147 = vand.u32 %v269, 4294901760
      %1148 = vmatpush1.msra.mxu0 %v1147
      %v1149 = vand.u32 %v332, 4294901760
      %1150 = vmatprep.subr.mxu0 %v1149
      %v1151 = vand.u32 %v331, 4294901760
      %1152 = vmatpush2.msra.mxu0 %v1151
      %v1153 = vand.u32 %v330, 4294901760
      %1154 = vmatprep.subr.mxu0 %v1153
      %v1155 = vand.u32 %v329, 4294901760
      %1156 = vmatpush2.msra.mxu0 %v1155
      %v1157 = vand.u32 %v328, 4294901760
      %1158 = vmatprep.subr.mxu0 %v1157
      %v1159 = vand.u32 %v327, 4294901760
      %1160 = vmatpush2.msra.mxu0 %v1159
      %v1161 = vand.u32 %v326, 4294901760
      %1162 = vmatprep.subr.mxu0 %v1161
      %v1163 = vand.u32 %v325, 4294901760
      %1164 = vmatpush2.msra.mxu0 %v1163
      %v1165 = vand.u32 %v324, 4294901760
      %1166 = vmatprep.subr.mxu0 %v1165
      %v1167 = vand.u32 %v323, 4294901760
      %1168 = vmatpush2.msra.mxu0 %v1167
      %v1169 = vand.u32 %v322, 4294901760
      %1170 = vmatprep.subr.mxu0 %v1169
      %v1171 = vand.u32 %v321, 4294901760
      %1172 = vmatpush2.msra.mxu0 %v1171
      %v1173 = vand.u32 %v320, 4294901760
      %1174 = vmatprep.subr.mxu0 %v1173
      %v1175 = vand.u32 %v319, 4294901760
      %1176 = vmatpush2.msra.mxu0 %v1175
      %v1177 = vand.u32 %v318, 4294901760
      %1178 = vmatprep.subr.mxu0 %v1177
      %v1179 = vand.u32 %v317, 4294901760
      %1180 = vmatpush2.msra.mxu0 %v1179
      %v1181 = vand.u32 %v316, 4294901760
      %1182 = vmatprep.subr.mxu0 %v1181
      %v1183 = vand.u32 %v315, 4294901760
      %1184 = vmatpush2.msra.mxu0 %v1183
      %v1185 = vand.u32 %v314, 4294901760
      %1186 = vmatprep.subr.mxu0 %v1185
      %v1187 = vand.u32 %v313, 4294901760
      %1188 = vmatpush2.msra.mxu0 %v1187
      %v1189 = vand.u32 %v312, 4294901760
      %1190 = vmatprep.subr.mxu0 %v1189
      %v1191 = vand.u32 %v311, 4294901760
      %1192 = vmatpush2.msra.mxu0 %v1191
      %v1193 = vand.u32 %v310, 4294901760
      %1194 = vmatprep.subr.mxu0 %v1193
      %v1195 = vand.u32 %v309, 4294901760
      %1196 = vmatpush2.msra.mxu0 %v1195
      %v1197 = vand.u32 %v308, 4294901760
      %1198 = vmatprep.subr.mxu0 %v1197
      %v1199 = vand.u32 %v307, 4294901760
      %1200 = vmatpush2.msra.mxu0 %v1199
      %v1201 = vand.u32 %v306, 4294901760
      %1202 = vmatprep.subr.mxu0 %v1201
      %v1203 = vand.u32 %v305, 4294901760
      %1204 = vmatpush2.msra.mxu0 %v1203
      %v1205 = vand.u32 %v304, 4294901760
      %1206 = vmatprep.subr.mxu0 %v1205
      %v1207 = vand.u32 %v303, 4294901760
      %1208 = vmatpush2.msra.mxu0 %v1207
      %v1209 = vand.u32 %v302, 4294901760
      %1210 = vmatprep.subr.mxu0 %v1209
      %v1211 = vand.u32 %v301, 4294901760
      %1212 = vmatpush2.msra.mxu0 %v1211
      %v1213 = vand.u32 %v341, 4294901760
      %v1214 = vsub.f32 %v341, %v1213
      %v1215 = vand.u32 %v1214, 4294901760
      %1216 = vmatprep.mubr.f32.mxu0 %v1215
      %v1217 = vand.u32 %v340, 4294901760
      %v1218 = vsub.f32 %v340, %v1217
      %v1219 = vand.u32 %v1218, 4294901760
      %1220 = vmatmul.mubr.f32.gmra.mxu0 %v1219
      %v1221 = vpop.f32.mrf.mxu0
      %v1222 = vadd.f32 %v1081, %v1221
      %v1223 = vpop.f32.mrf.mxu0
      %v1224 = vadd.f32 %v1083, %v1223
      %1225 = vdwg.mxu0
      %v1226 = vand.u32 %v300, 4294901760
      %v1227 = vsub.f32 %v300, %v1226
      %v1228 = vand.u32 %v1227, 4294901760
      %1229 = vmatprep.subr.mxu0 %v1228
      %v1230 = vand.u32 %v299, 4294901760
      %v1231 = vsub.f32 %v299, %v1230
      %v1232 = vand.u32 %v1231, 4294901760
      %1233 = vmatpush1.msra.mxu0 %v1232
      %v1234 = vand.u32 %v298, 4294901760
      %v1235 = vsub.f32 %v298, %v1234
      %v1236 = vand.u32 %v1235, 4294901760
      %1237 = vmatprep.subr.mxu0 %v1236
      %v1238 = vand.u32 %v297, 4294901760
      %v1239 = vsub.f32 %v297, %v1238
      %v1240 = vand.u32 %v1239, 4294901760
      %1241 = vmatpush1.msra.mxu0 %v1240
      %v1242 = vand.u32 %v296, 4294901760
      %v1243 = vsub.f32 %v296, %v1242
      %v1244 = vand.u32 %v1243, 4294901760
      %1245 = vmatprep.subr.mxu0 %v1244
      %v1246 = vand.u32 %v295, 4294901760
      %v1247 = vsub.f32 %v295, %v1246
      %v1248 = vand.u32 %v1247, 4294901760
      %1249 = vmatpush1.msra.mxu0 %v1248
      %v1250 = vand.u32 %v294, 4294901760
      %v1251 = vsub.f32 %v294, %v1250
      %v1252 = vand.u32 %v1251, 4294901760
      %1253 = vmatprep.subr.mxu0 %v1252
      %v1254 = vand.u32 %v293, 4294901760
      %v1255 = vsub.f32 %v293, %v1254
      %v1256 = vand.u32 %v1255, 4294901760
      %1257 = vmatpush1.msra.mxu0 %v1256
      %v1258 = vand.u32 %v292, 4294901760
      %v1259 = vsub.f32 %v292, %v1258
      %v1260 = vand.u32 %v1259, 4294901760
      %1261 = vmatprep.subr.mxu0 %v1260
      %v1262 = vand.u32 %v291, 4294901760
      %v1263 = vsub.f32 %v291, %v1262
      %v1264 = vand.u32 %v1263, 4294901760
      %1265 = vmatpush1.msra.mxu0 %v1264
      %v1266 = vand.u32 %v290, 4294901760
      %v1267 = vsub.f32 %v290, %v1266
      %v1268 = vand.u32 %v1267, 4294901760
      %1269 = vmatprep.subr.mxu0 %v1268
      %v1270 = vand.u32 %v289, 4294901760
      %v1271 = vsub.f32 %v289, %v1270
      %v1272 = vand.u32 %v1271, 4294901760
      %1273 = vmatpush1.msra.mxu0 %v1272
      %v1274 = vand.u32 %v288, 4294901760
      %v1275 = vsub.f32 %v288, %v1274
      %v1276 = vand.u32 %v1275, 4294901760
      %1277 = vmatprep.subr.mxu0 %v1276
      %v1278 = vand.u32 %v287, 4294901760
      %v1279 = vsub.f32 %v287, %v1278
      %v1280 = vand.u32 %v1279, 4294901760
      %1281 = vmatpush1.msra.mxu0 %v1280
      %v1282 = vand.u32 %v286, 4294901760
      %v1283 = vsub.f32 %v286, %v1282
      %v1284 = vand.u32 %v1283, 4294901760
      %1285 = vmatprep.subr.mxu0 %v1284
      %v1286 = vand.u32 %v285, 4294901760
      %v1287 = vsub.f32 %v285, %v1286
      %v1288 = vand.u32 %v1287, 4294901760
      %1289 = vmatpush1.msra.mxu0 %v1288
      %v1290 = vand.u32 %v284, 4294901760
      %v1291 = vsub.f32 %v284, %v1290
      %v1292 = vand.u32 %v1291, 4294901760
      %1293 = vmatprep.subr.mxu0 %v1292
      %v1294 = vand.u32 %v283, 4294901760
      %v1295 = vsub.f32 %v283, %v1294
      %v1296 = vand.u32 %v1295, 4294901760
      %1297 = vmatpush1.msra.mxu0 %v1296
      %v1298 = vand.u32 %v282, 4294901760
      %v1299 = vsub.f32 %v282, %v1298
      %v1300 = vand.u32 %v1299, 4294901760
      %1301 = vmatprep.subr.mxu0 %v1300
      %v1302 = vand.u32 %v281, 4294901760
      %v1303 = vsub.f32 %v281, %v1302
      %v1304 = vand.u32 %v1303, 4294901760
      %1305 = vmatpush1.msra.mxu0 %v1304
      %v1306 = vand.u32 %v280, 4294901760
      %v1307 = vsub.f32 %v280, %v1306
      %v1308 = vand.u32 %v1307, 4294901760
      %1309 = vmatprep.subr.mxu0 %v1308
      %v1310 = vand.u32 %v279, 4294901760
      %v1311 = vsub.f32 %v279, %v1310
      %v1312 = vand.u32 %v1311, 4294901760
      %1313 = vmatpush1.msra.mxu0 %v1312
      %v1314 = vand.u32 %v278, 4294901760
      %v1315 = vsub.f32 %v278, %v1314
      %v1316 = vand.u32 %v1315, 4294901760
      %1317 = vmatprep.subr.mxu0 %v1316
      %v1318 = vand.u32 %v277, 4294901760
      %v1319 = vsub.f32 %v277, %v1318
      %v1320 = vand.u32 %v1319, 4294901760
      %1321 = vmatpush1.msra.mxu0 %v1320
      %v1322 = vand.u32 %v276, 4294901760
      %v1323 = vsub.f32 %v276, %v1322
      %v1324 = vand.u32 %v1323, 4294901760
      %1325 = vmatprep.subr.mxu0 %v1324
      %v1326 = vand.u32 %v275, 4294901760
      %v1327 = vsub.f32 %v275, %v1326
      %v1328 = vand.u32 %v1327, 4294901760
      %1329 = vmatpush1.msra.mxu0 %v1328
      %v1330 = vand.u32 %v274, 4294901760
      %v1331 = vsub.f32 %v274, %v1330
      %v1332 = vand.u32 %v1331, 4294901760
      %1333 = vmatprep.subr.mxu0 %v1332
      %v1334 = vand.u32 %v273, 4294901760
      %v1335 = vsub.f32 %v273, %v1334
      %v1336 = vand.u32 %v1335, 4294901760
      %1337 = vmatpush1.msra.mxu0 %v1336
      %v1338 = vand.u32 %v272, 4294901760
      %v1339 = vsub.f32 %v272, %v1338
      %v1340 = vand.u32 %v1339, 4294901760
      %1341 = vmatprep.subr.mxu0 %v1340
      %v1342 = vand.u32 %v271, 4294901760
      %v1343 = vsub.f32 %v271, %v1342
      %v1344 = vand.u32 %v1343, 4294901760
      %1345 = vmatpush1.msra.mxu0 %v1344
      %v1346 = vand.u32 %v270, 4294901760
      %v1347 = vsub.f32 %v270, %v1346
      %v1348 = vand.u32 %v1347, 4294901760
      %1349 = vmatprep.subr.mxu0 %v1348
      %v1350 = vand.u32 %v269, 4294901760
      %v1351 = vsub.f32 %v269, %v1350
      %v1352 = vand.u32 %v1351, 4294901760
      %1353 = vmatpush1.msra.mxu0 %v1352
      %v1354 = vand.u32 %v332, 4294901760
      %v1355 = vsub.f32 %v332, %v1354
      %v1356 = vand.u32 %v1355, 4294901760
      %1357 = vmatprep.subr.mxu0 %v1356
      %v1358 = vand.u32 %v331, 4294901760
      %v1359 = vsub.f32 %v331, %v1358
      %v1360 = vand.u32 %v1359, 4294901760
      %1361 = vmatpush2.msra.mxu0 %v1360
      %v1362 = vand.u32 %v330, 4294901760
      %v1363 = vsub.f32 %v330, %v1362
      %v1364 = vand.u32 %v1363, 4294901760
      %1365 = vmatprep.subr.mxu0 %v1364
      %v1366 = vand.u32 %v329, 4294901760
      %v1367 = vsub.f32 %v329, %v1366
      %v1368 = vand.u32 %v1367, 4294901760
      %1369 = vmatpush2.msra.mxu0 %v1368
      %v1370 = vand.u32 %v328, 4294901760
      %v1371 = vsub.f32 %v328, %v1370
      %v1372 = vand.u32 %v1371, 4294901760
      %1373 = vmatprep.subr.mxu0 %v1372
      %v1374 = vand.u32 %v327, 4294901760
      %v1375 = vsub.f32 %v327, %v1374
      %v1376 = vand.u32 %v1375, 4294901760
      %1377 = vmatpush2.msra.mxu0 %v1376
      %v1378 = vand.u32 %v326, 4294901760
      %v1379 = vsub.f32 %v326, %v1378
      %v1380 = vand.u32 %v1379, 4294901760
      %1381 = vmatprep.subr.mxu0 %v1380
      %v1382 = vand.u32 %v325, 4294901760
      %v1383 = vsub.f32 %v325, %v1382
      %v1384 = vand.u32 %v1383, 4294901760
      %1385 = vmatpush2.msra.mxu0 %v1384
      %v1386 = vand.u32 %v324, 4294901760
      %v1387 = vsub.f32 %v324, %v1386
      %v1388 = vand.u32 %v1387, 4294901760
      %1389 = vmatprep.subr.mxu0 %v1388
      %v1390 = vand.u32 %v323, 4294901760
      %v1391 = vsub.f32 %v323, %v1390
      %v1392 = vand.u32 %v1391, 4294901760
      %1393 = vmatpush2.msra.mxu0 %v1392
      %v1394 = vand.u32 %v322, 4294901760
      %v1395 = vsub.f32 %v322, %v1394
      %v1396 = vand.u32 %v1395, 4294901760
      %1397 = vmatprep.subr.mxu0 %v1396
      %v1398 = vand.u32 %v321, 4294901760
      %v1399 = vsub.f32 %v321, %v1398
      %v1400 = vand.u32 %v1399, 4294901760
      %1401 = vmatpush2.msra.mxu0 %v1400
      %v1402 = vand.u32 %v320, 4294901760
      %v1403 = vsub.f32 %v320, %v1402
      %v1404 = vand.u32 %v1403, 4294901760
      %1405 = vmatprep.subr.mxu0 %v1404
      %v1406 = vand.u32 %v319, 4294901760
      %v1407 = vsub.f32 %v319, %v1406
      %v1408 = vand.u32 %v1407, 4294901760
      %1409 = vmatpush2.msra.mxu0 %v1408
      %v1410 = vand.u32 %v318, 4294901760
      %v1411 = vsub.f32 %v318, %v1410
      %v1412 = vand.u32 %v1411, 4294901760
      %1413 = vmatprep.subr.mxu0 %v1412
      %v1414 = vand.u32 %v317, 4294901760
      %v1415 = vsub.f32 %v317, %v1414
      %v1416 = vand.u32 %v1415, 4294901760
      %1417 = vmatpush2.msra.mxu0 %v1416
      %v1418 = vand.u32 %v316, 4294901760
      %v1419 = vsub.f32 %v316, %v1418
      %v1420 = vand.u32 %v1419, 4294901760
      %1421 = vmatprep.subr.mxu0 %v1420
      %v1422 = vand.u32 %v315, 4294901760
      %v1423 = vsub.f32 %v315, %v1422
      %v1424 = vand.u32 %v1423, 4294901760
      %1425 = vmatpush2.msra.mxu0 %v1424
      %v1426 = vand.u32 %v314, 4294901760
      %v1427 = vsub.f32 %v314, %v1426
      %v1428 = vand.u32 %v1427, 4294901760
      %1429 = vmatprep.subr.mxu0 %v1428
      %v1430 = vand.u32 %v313, 4294901760
      %v1431 = vsub.f32 %v313, %v1430
      %v1432 = vand.u32 %v1431, 4294901760
      %1433 = vmatpush2.msra.mxu0 %v1432
      %v1434 = vand.u32 %v312, 4294901760
      %v1435 = vsub.f32 %v312, %v1434
      %v1436 = vand.u32 %v1435, 4294901760
      %1437 = vmatprep.subr.mxu0 %v1436
      %v1438 = vand.u32 %v311, 4294901760
      %v1439 = vsub.f32 %v311, %v1438
      %v1440 = vand.u32 %v1439, 4294901760
      %1441 = vmatpush2.msra.mxu0 %v1440
      %v1442 = vand.u32 %v310, 4294901760
      %v1443 = vsub.f32 %v310, %v1442
      %v1444 = vand.u32 %v1443, 4294901760
      %1445 = vmatprep.subr.mxu0 %v1444
      %v1446 = vand.u32 %v309, 4294901760
      %v1447 = vsub.f32 %v309, %v1446
      %v1448 = vand.u32 %v1447, 4294901760
      %1449 = vmatpush2.msra.mxu0 %v1448
      %v1450 = vand.u32 %v308, 4294901760
      %v1451 = vsub.f32 %v308, %v1450
      %v1452 = vand.u32 %v1451, 4294901760
      %1453 = vmatprep.subr.mxu0 %v1452
      %v1454 = vand.u32 %v307, 4294901760
      %v1455 = vsub.f32 %v307, %v1454
      %v1456 = vand.u32 %v1455, 4294901760
      %1457 = vmatpush2.msra.mxu0 %v1456
      %v1458 = vand.u32 %v306, 4294901760
      %v1459 = vsub.f32 %v306, %v1458
      %v1460 = vand.u32 %v1459, 4294901760
      %1461 = vmatprep.subr.mxu0 %v1460
      %v1462 = vand.u32 %v305, 4294901760
      %v1463 = vsub.f32 %v305, %v1462
      %v1464 = vand.u32 %v1463, 4294901760
      %1465 = vmatpush2.msra.mxu0 %v1464
      %v1466 = vand.u32 %v304, 4294901760
      %v1467 = vsub.f32 %v304, %v1466
      %v1468 = vand.u32 %v1467, 4294901760
      %1469 = vmatprep.subr.mxu0 %v1468
      %v1470 = vand.u32 %v303, 4294901760
      %v1471 = vsub.f32 %v303, %v1470
      %v1472 = vand.u32 %v1471, 4294901760
      %1473 = vmatpush2.msra.mxu0 %v1472
      %v1474 = vand.u32 %v302, 4294901760
      %v1475 = vsub.f32 %v302, %v1474
      %v1476 = vand.u32 %v1475, 4294901760
      %1477 = vmatprep.subr.mxu0 %v1476
      %v1478 = vand.u32 %v301, 4294901760
      %v1479 = vsub.f32 %v301, %v1478
      %v1480 = vand.u32 %v1479, 4294901760
      %1481 = vmatpush2.msra.mxu0 %v1480
      %v1482 = vand.u32 %v341, 4294901760
      %1483 = vmatprep.mubr.f32.mxu0 %v1482
      %v1484 = vand.u32 %v340, 4294901760
      %1485 = vmatmul.mubr.f32.gmra.mxu0 %v1484
      %v1486 = vpop.f32.mrf.mxu0
      %v1487 = vadd.f32 %v1222, %v1486
      %v1488 = vpop.f32.mrf.mxu0
      %v1489 = vadd.f32 %v1224, %v1488
      %1490 = vdwg.mxu0
      %v1491 = vand.u32 %v300, 4294901760
      %1492 = vmatprep.subr.mxu0 %v1491
      %v1493 = vand.u32 %v299, 4294901760
      %1494 = vmatpush1.msra.mxu0 %v1493
      %v1495 = vand.u32 %v298, 4294901760
      %1496 = vmatprep.subr.mxu0 %v1495
      %v1497 = vand.u32 %v297, 4294901760
      %1498 = vmatpush1.msra.mxu0 %v1497
      %v1499 = vand.u32 %v296, 4294901760
      %1500 = vmatprep.subr.mxu0 %v1499
      %v1501 = vand.u32 %v295, 4294901760
      %1502 = vmatpush1.msra.mxu0 %v1501
      %v1503 = vand.u32 %v294, 4294901760
      %1504 = vmatprep.subr.mxu0 %v1503
      %v1505 = vand.u32 %v293, 4294901760
      %1506 = vmatpush1.msra.mxu0 %v1505
      %v1507 = vand.u32 %v292, 4294901760
      %1508 = vmatprep.subr.mxu0 %v1507
      %v1509 = vand.u32 %v291, 4294901760
      %1510 = vmatpush1.msra.mxu0 %v1509
      %v1511 = vand.u32 %v290, 4294901760
      %1512 = vmatprep.subr.mxu0 %v1511
      %v1513 = vand.u32 %v289, 4294901760
      %1514 = vmatpush1.msra.mxu0 %v1513
      %v1515 = vand.u32 %v288, 4294901760
      %1516 = vmatprep.subr.mxu0 %v1515
      %v1517 = vand.u32 %v287, 4294901760
      %1518 = vmatpush1.msra.mxu0 %v1517
      %v1519 = vand.u32 %v286, 4294901760
      %1520 = vmatprep.subr.mxu0 %v1519
      %v1521 = vand.u32 %v285, 4294901760
      %1522 = vmatpush1.msra.mxu0 %v1521
      %v1523 = vand.u32 %v284, 4294901760
      %1524 = vmatprep.subr.mxu0 %v1523
      %v1525 = vand.u32 %v283, 4294901760
      %1526 = vmatpush1.msra.mxu0 %v1525
      %v1527 = vand.u32 %v282, 4294901760
      %1528 = vmatprep.subr.mxu0 %v1527
      %v1529 = vand.u32 %v281, 4294901760
      %1530 = vmatpush1.msra.mxu0 %v1529
      %v1531 = vand.u32 %v280, 4294901760
      %1532 = vmatprep.subr.mxu0 %v1531
      %v1533 = vand.u32 %v279, 4294901760
      %1534 = vmatpush1.msra.mxu0 %v1533
      %v1535 = vand.u32 %v278, 4294901760
      %1536 = vmatprep.subr.mxu0 %v1535
      %v1537 = vand.u32 %v277, 4294901760
      %1538 = vmatpush1.msra.mxu0 %v1537
      %v1539 = vand.u32 %v276, 4294901760
      %1540 = vmatprep.subr.mxu0 %v1539
      %v1541 = vand.u32 %v275, 4294901760
      %1542 = vmatpush1.msra.mxu0 %v1541
      %v1543 = vand.u32 %v274, 4294901760
      %1544 = vmatprep.subr.mxu0 %v1543
      %v1545 = vand.u32 %v273, 4294901760
      %1546 = vmatpush1.msra.mxu0 %v1545
      %v1547 = vand.u32 %v272, 4294901760
      %1548 = vmatprep.subr.mxu0 %v1547
      %v1549 = vand.u32 %v271, 4294901760
      %1550 = vmatpush1.msra.mxu0 %v1549
      %v1551 = vand.u32 %v270, 4294901760
      %1552 = vmatprep.subr.mxu0 %v1551
      %v1553 = vand.u32 %v269, 4294901760
      %1554 = vmatpush1.msra.mxu0 %v1553
      %v1555 = vand.u32 %v332, 4294901760
      %1556 = vmatprep.subr.mxu0 %v1555
      %v1557 = vand.u32 %v331, 4294901760
      %1558 = vmatpush2.msra.mxu0 %v1557
      %v1559 = vand.u32 %v330, 4294901760
      %1560 = vmatprep.subr.mxu0 %v1559
      %v1561 = vand.u32 %v329, 4294901760
      %1562 = vmatpush2.msra.mxu0 %v1561
      %v1563 = vand.u32 %v328, 4294901760
      %1564 = vmatprep.subr.mxu0 %v1563
      %v1565 = vand.u32 %v327, 4294901760
      %1566 = vmatpush2.msra.mxu0 %v1565
      %v1567 = vand.u32 %v326, 4294901760
      %1568 = vmatprep.subr.mxu0 %v1567
      %v1569 = vand.u32 %v325, 4294901760
      %1570 = vmatpush2.msra.mxu0 %v1569
      %v1571 = vand.u32 %v324, 4294901760
      %1572 = vmatprep.subr.mxu0 %v1571
      %v1573 = vand.u32 %v323, 4294901760
      %1574 = vmatpush2.msra.mxu0 %v1573
      %v1575 = vand.u32 %v322, 4294901760
      %1576 = vmatprep.subr.mxu0 %v1575
      %v1577 = vand.u32 %v321, 4294901760
      %1578 = vmatpush2.msra.mxu0 %v1577
      %v1579 = vand.u32 %v320, 4294901760
      %1580 = vmatprep.subr.mxu0 %v1579
      %v1581 = vand.u32 %v319, 4294901760
      %1582 = vmatpush2.msra.mxu0 %v1581
      %v1583 = vand.u32 %v318, 4294901760
      %1584 = vmatprep.subr.mxu0 %v1583
      %v1585 = vand.u32 %v317, 4294901760
      %1586 = vmatpush2.msra.mxu0 %v1585
      %v1587 = vand.u32 %v316, 4294901760
      %1588 = vmatprep.subr.mxu0 %v1587
      %v1589 = vand.u32 %v315, 4294901760
      %1590 = vmatpush2.msra.mxu0 %v1589
      %v1591 = vand.u32 %v314, 4294901760
      %1592 = vmatprep.subr.mxu0 %v1591
      %v1593 = vand.u32 %v313, 4294901760
      %1594 = vmatpush2.msra.mxu0 %v1593
      %v1595 = vand.u32 %v312, 4294901760
      %1596 = vmatprep.subr.mxu0 %v1595
      %v1597 = vand.u32 %v311, 4294901760
      %1598 = vmatpush2.msra.mxu0 %v1597
      %v1599 = vand.u32 %v310, 4294901760
      %1600 = vmatprep.subr.mxu0 %v1599
      %v1601 = vand.u32 %v309, 4294901760
      %1602 = vmatpush2.msra.mxu0 %v1601
      %v1603 = vand.u32 %v308, 4294901760
      %1604 = vmatprep.subr.mxu0 %v1603
      %v1605 = vand.u32 %v307, 4294901760
      %1606 = vmatpush2.msra.mxu0 %v1605
      %v1607 = vand.u32 %v306, 4294901760
      %1608 = vmatprep.subr.mxu0 %v1607
      %v1609 = vand.u32 %v305, 4294901760
      %1610 = vmatpush2.msra.mxu0 %v1609
      %v1611 = vand.u32 %v304, 4294901760
      %1612 = vmatprep.subr.mxu0 %v1611
      %v1613 = vand.u32 %v303, 4294901760
      %1614 = vmatpush2.msra.mxu0 %v1613
      %v1615 = vand.u32 %v302, 4294901760
      %1616 = vmatprep.subr.mxu0 %v1615
      %v1617 = vand.u32 %v301, 4294901760
      %1618 = vmatpush2.msra.mxu0 %v1617
      %v1619 = vand.u32 %v341, 4294901760
      %1620 = vmatprep.mubr.f32.mxu0 %v1619
      %v1621 = vand.u32 %v340, 4294901760
      %1622 = vmatmul.mubr.f32.gmra.mxu0 %v1621
      %v1623 = vpop.f32.mrf.mxu0
      %v1624 = vadd.f32 %v1487, %v1623
      %v1625 = vpop.f32.mrf.mxu0
      %v1626 = vadd.f32 %v1489, %v1625
      %1627 = vdwg.mxu0
      %v1630 = vunpack.c.l.s4 1983009808
      %v1631 = vunpack.c.0.s8 %v1630
      %v1632 = vlaneseq
      %v1633 = vshrl.u32 %v1632, 7
      %v1634 = vsub.s32 %v1631, %v1633
      %v1635 = vrot.slane %v203, %v1634
      %v1636 = vcombine.high %v1635, %v1635
      %v1639 = vand.u32 %v236, 4294901760
      %1640 = vmatprep.subr.mxu0 %v1639
      %v1641 = vand.u32 %v235, 4294901760
      %1642 = vmatpush1.msra.mxu0 %v1641
      %v1643 = vand.u32 %v234, 4294901760
      %1644 = vmatprep.subr.mxu0 %v1643
      %v1645 = vand.u32 %v233, 4294901760
      %1646 = vmatpush1.msra.mxu0 %v1645
      %v1647 = vand.u32 %v232, 4294901760
      %1648 = vmatprep.subr.mxu0 %v1647
      %v1649 = vand.u32 %v231, 4294901760
      %1650 = vmatpush1.msra.mxu0 %v1649
      %v1651 = vand.u32 %v230, 4294901760
      %1652 = vmatprep.subr.mxu0 %v1651
      %v1653 = vand.u32 %v229, 4294901760
      %1654 = vmatpush1.msra.mxu0 %v1653
      %v1655 = vand.u32 %v228, 4294901760
      %1656 = vmatprep.subr.mxu0 %v1655
      %v1657 = vand.u32 %v227, 4294901760
      %1658 = vmatpush1.msra.mxu0 %v1657
      %v1659 = vand.u32 %v226, 4294901760
      %1660 = vmatprep.subr.mxu0 %v1659
      %v1661 = vand.u32 %v225, 4294901760
      %1662 = vmatpush1.msra.mxu0 %v1661
      %v1663 = vand.u32 %v224, 4294901760
      %1664 = vmatprep.subr.mxu0 %v1663
      %v1665 = vand.u32 %v223, 4294901760
      %1666 = vmatpush1.msra.mxu0 %v1665
      %v1667 = vand.u32 %v222, 4294901760
      %1668 = vmatprep.subr.mxu0 %v1667
      %v1669 = vand.u32 %v221, 4294901760
      %1670 = vmatpush1.msra.mxu0 %v1669
      %v1671 = vand.u32 %v220, 4294901760
      %1672 = vmatprep.subr.mxu0 %v1671
      %v1673 = vand.u32 %v219, 4294901760
      %1674 = vmatpush1.msra.mxu0 %v1673
      %v1675 = vand.u32 %v218, 4294901760
      %1676 = vmatprep.subr.mxu0 %v1675
      %v1677 = vand.u32 %v217, 4294901760
      %1678 = vmatpush1.msra.mxu0 %v1677
      %v1679 = vand.u32 %v216, 4294901760
      %1680 = vmatprep.subr.mxu0 %v1679
      %v1681 = vand.u32 %v215, 4294901760
      %1682 = vmatpush1.msra.mxu0 %v1681
      %v1683 = vand.u32 %v214, 4294901760
      %1684 = vmatprep.subr.mxu0 %v1683
      %v1685 = vand.u32 %v213, 4294901760
      %1686 = vmatpush1.msra.mxu0 %v1685
      %v1687 = vand.u32 %v212, 4294901760
      %1688 = vmatprep.subr.mxu0 %v1687
      %v1689 = vand.u32 %v211, 4294901760
      %1690 = vmatpush1.msra.mxu0 %v1689
      %v1691 = vand.u32 %v210, 4294901760
      %1692 = vmatprep.subr.mxu0 %v1691
      %v1693 = vand.u32 %v209, 4294901760
      %1694 = vmatpush1.msra.mxu0 %v1693
      %v1695 = vand.u32 %v208, 4294901760
      %1696 = vmatprep.subr.mxu0 %v1695
      %v1697 = vand.u32 %v207, 4294901760
      %1698 = vmatpush1.msra.mxu0 %v1697
      %v1699 = vand.u32 %v206, 4294901760
      %1700 = vmatprep.subr.mxu0 %v1699
      %v1701 = vand.u32 %v205, 4294901760
      %1702 = vmatpush1.msra.mxu0 %v1701
      %v1703 = vand.u32 %v268, 4294901760
      %1704 = vmatprep.subr.mxu0 %v1703
      %v1705 = vand.u32 %v267, 4294901760
      %1706 = vmatpush2.msra.mxu0 %v1705
      %v1707 = vand.u32 %v266, 4294901760
      %1708 = vmatprep.subr.mxu0 %v1707
      %v1709 = vand.u32 %v265, 4294901760
      %1710 = vmatpush2.msra.mxu0 %v1709
      %v1711 = vand.u32 %v264, 4294901760
      %1712 = vmatprep.subr.mxu0 %v1711
      %v1713 = vand.u32 %v263, 4294901760
      %1714 = vmatpush2.msra.mxu0 %v1713
      %v1715 = vand.u32 %v262, 4294901760
      %1716 = vmatprep.subr.mxu0 %v1715
      %v1717 = vand.u32 %v261, 4294901760
      %1718 = vmatpush2.msra.mxu0 %v1717
      %v1719 = vand.u32 %v260, 4294901760
      %1720 = vmatprep.subr.mxu0 %v1719
      %v1721 = vand.u32 %v259, 4294901760
      %1722 = vmatpush2.msra.mxu0 %v1721
      %v1723 = vand.u32 %v258, 4294901760
      %1724 = vmatprep.subr.mxu0 %v1723
      %v1725 = vand.u32 %v257, 4294901760
      %1726 = vmatpush2.msra.mxu0 %v1725
      %v1727 = vand.u32 %v256, 4294901760
      %1728 = vmatprep.subr.mxu0 %v1727
      %v1729 = vand.u32 %v255, 4294901760
      %1730 = vmatpush2.msra.mxu0 %v1729
      %v1731 = vand.u32 %v254, 4294901760
      %1732 = vmatprep.subr.mxu0 %v1731
      %v1733 = vand.u32 %v253, 4294901760
      %1734 = vmatpush2.msra.mxu0 %v1733
      %v1735 = vand.u32 %v252, 4294901760
      %1736 = vmatprep.subr.mxu0 %v1735
      %v1737 = vand.u32 %v251, 4294901760
      %1738 = vmatpush2.msra.mxu0 %v1737
      %v1739 = vand.u32 %v250, 4294901760
      %1740 = vmatprep.subr.mxu0 %v1739
      %v1741 = vand.u32 %v249, 4294901760
      %1742 = vmatpush2.msra.mxu0 %v1741
      %v1743 = vand.u32 %v248, 4294901760
      %1744 = vmatprep.subr.mxu0 %v1743
      %v1745 = vand.u32 %v247, 4294901760
      %1746 = vmatpush2.msra.mxu0 %v1745
      %v1747 = vand.u32 %v246, 4294901760
      %1748 = vmatprep.subr.mxu0 %v1747
      %v1749 = vand.u32 %v245, 4294901760
      %1750 = vmatpush2.msra.mxu0 %v1749
      %v1751 = vand.u32 %v244, 4294901760
      %1752 = vmatprep.subr.mxu0 %v1751
      %v1753 = vand.u32 %v243, 4294901760
      %1754 = vmatpush2.msra.mxu0 %v1753
      %v1755 = vand.u32 %v242, 4294901760
      %1756 = vmatprep.subr.mxu0 %v1755
      %v1757 = vand.u32 %v241, 4294901760
      %1758 = vmatpush2.msra.mxu0 %v1757
      %v1759 = vand.u32 %v240, 4294901760
      %1760 = vmatprep.subr.mxu0 %v1759
      %v1761 = vand.u32 %v239, 4294901760
      %1762 = vmatpush2.msra.mxu0 %v1761
      %v1763 = vand.u32 %v238, 4294901760
      %1764 = vmatprep.subr.mxu0 %v1763
      %v1765 = vand.u32 %v237, 4294901760
      %1766 = vmatpush2.msra.mxu0 %v1765
      %v1767 = vand.u32 %v1636, 4294901760
      %v1768 = vsub.f32 %v1636, %v1767
      %v1769 = vand.u32 %v1768, 4294901760
      %v1770 = vsub.f32 %v1768, %v1769
      %v1771 = vand.u32 %v1770, 4294901760
      %1772 = vmatprep.mubr.f32.mxu0 %v1771
      %v1773 = vand.u32 %v1635, 4294901760
      %v1774 = vsub.f32 %v1635, %v1773
      %v1775 = vand.u32 %v1774, 4294901760
      %v1776 = vsub.f32 %v1774, %v1775
      %v1777 = vand.u32 %v1776, 4294901760
      %1778 = vmatmul.mubr.f32.gmra.mxu0 %v1777
      %v1779 = vpop.f32.mrf.mxu0
      %v1780 = vadd.f32 %v1624, %v1779
      %v1781 = vpop.f32.mrf.mxu0
      %v1782 = vadd.f32 %v1626, %v1781
      %1783 = vdwg.mxu0
      %v1784 = vand.u32 %v236, 4294901760
      %v1785 = vsub.f32 %v236, %v1784
      %v1786 = vand.u32 %v1785, 4294901760
      %v1787 = vsub.f32 %v1785, %v1786
      %v1788 = vand.u32 %v1787, 4294901760
      %1789 = vmatprep.subr.mxu0 %v1788
      %v1790 = vand.u32 %v235, 4294901760
      %v1791 = vsub.f32 %v235, %v1790
      %v1792 = vand.u32 %v1791, 4294901760
      %v1793 = vsub.f32 %v1791, %v1792
      %v1794 = vand.u32 %v1793, 4294901760
      %1795 = vmatpush1.msra.mxu0 %v1794
      %v1796 = vand.u32 %v234, 4294901760
      %v1797 = vsub.f32 %v234, %v1796
      %v1798 = vand.u32 %v1797, 4294901760
      %v1799 = vsub.f32 %v1797, %v1798
      %v1800 = vand.u32 %v1799, 4294901760
      %1801 = vmatprep.subr.mxu0 %v1800
      %v1802 = vand.u32 %v233, 4294901760
      %v1803 = vsub.f32 %v233, %v1802
      %v1804 = vand.u32 %v1803, 4294901760
      %v1805 = vsub.f32 %v1803, %v1804
      %v1806 = vand.u32 %v1805, 4294901760
      %1807 = vmatpush1.msra.mxu0 %v1806
      %v1808 = vand.u32 %v232, 4294901760
      %v1809 = vsub.f32 %v232, %v1808
      %v1810 = vand.u32 %v1809, 4294901760
      %v1811 = vsub.f32 %v1809, %v1810
      %v1812 = vand.u32 %v1811, 4294901760
      %1813 = vmatprep.subr.mxu0 %v1812
      %v1814 = vand.u32 %v231, 4294901760
      %v1815 = vsub.f32 %v231, %v1814
      %v1816 = vand.u32 %v1815, 4294901760
      %v1817 = vsub.f32 %v1815, %v1816
      %v1818 = vand.u32 %v1817, 4294901760
      %1819 = vmatpush1.msra.mxu0 %v1818
      %v1820 = vand.u32 %v230, 4294901760
      %v1821 = vsub.f32 %v230, %v1820
      %v1822 = vand.u32 %v1821, 4294901760
      %v1823 = vsub.f32 %v1821, %v1822
      %v1824 = vand.u32 %v1823, 4294901760
      %1825 = vmatprep.subr.mxu0 %v1824
      %v1826 = vand.u32 %v229, 4294901760
      %v1827 = vsub.f32 %v229, %v1826
      %v1828 = vand.u32 %v1827, 4294901760
      %v1829 = vsub.f32 %v1827, %v1828
      %v1830 = vand.u32 %v1829, 4294901760
      %1831 = vmatpush1.msra.mxu0 %v1830
      %v1832 = vand.u32 %v228, 4294901760
      %v1833 = vsub.f32 %v228, %v1832
      %v1834 = vand.u32 %v1833, 4294901760
      %v1835 = vsub.f32 %v1833, %v1834
      %v1836 = vand.u32 %v1835, 4294901760
      %1837 = vmatprep.subr.mxu0 %v1836
      %v1838 = vand.u32 %v227, 4294901760
      %v1839 = vsub.f32 %v227, %v1838
      %v1840 = vand.u32 %v1839, 4294901760
      %v1841 = vsub.f32 %v1839, %v1840
      %v1842 = vand.u32 %v1841, 4294901760
      %1843 = vmatpush1.msra.mxu0 %v1842
      %v1844 = vand.u32 %v226, 4294901760
      %v1845 = vsub.f32 %v226, %v1844
      %v1846 = vand.u32 %v1845, 4294901760
      %v1847 = vsub.f32 %v1845, %v1846
      %v1848 = vand.u32 %v1847, 4294901760
      %1849 = vmatprep.subr.mxu0 %v1848
      %v1850 = vand.u32 %v225, 4294901760
      %v1851 = vsub.f32 %v225, %v1850
      %v1852 = vand.u32 %v1851, 4294901760
      %v1853 = vsub.f32 %v1851, %v1852
      %v1854 = vand.u32 %v1853, 4294901760
      %1855 = vmatpush1.msra.mxu0 %v1854
      %v1856 = vand.u32 %v224, 4294901760
      %v1857 = vsub.f32 %v224, %v1856
      %v1858 = vand.u32 %v1857, 4294901760
      %v1859 = vsub.f32 %v1857, %v1858
      %v1860 = vand.u32 %v1859, 4294901760
      %1861 = vmatprep.subr.mxu0 %v1860
      %v1862 = vand.u32 %v223, 4294901760
      %v1863 = vsub.f32 %v223, %v1862
      %v1864 = vand.u32 %v1863, 4294901760
      %v1865 = vsub.f32 %v1863, %v1864
      %v1866 = vand.u32 %v1865, 4294901760
      %1867 = vmatpush1.msra.mxu0 %v1866
      %v1868 = vand.u32 %v222, 4294901760
      %v1869 = vsub.f32 %v222, %v1868
      %v1870 = vand.u32 %v1869, 4294901760
      %v1871 = vsub.f32 %v1869, %v1870
      %v1872 = vand.u32 %v1871, 4294901760
      %1873 = vmatprep.subr.mxu0 %v1872
      %v1874 = vand.u32 %v221, 4294901760
      %v1875 = vsub.f32 %v221, %v1874
      %v1876 = vand.u32 %v1875, 4294901760
      %v1877 = vsub.f32 %v1875, %v1876
      %v1878 = vand.u32 %v1877, 4294901760
      %1879 = vmatpush1.msra.mxu0 %v1878
      %v1880 = vand.u32 %v220, 4294901760
      %v1881 = vsub.f32 %v220, %v1880
      %v1882 = vand.u32 %v1881, 4294901760
      %v1883 = vsub.f32 %v1881, %v1882
      %v1884 = vand.u32 %v1883, 4294901760
      %1885 = vmatprep.subr.mxu0 %v1884
      %v1886 = vand.u32 %v219, 4294901760
      %v1887 = vsub.f32 %v219, %v1886
      %v1888 = vand.u32 %v1887, 4294901760
      %v1889 = vsub.f32 %v1887, %v1888
      %v1890 = vand.u32 %v1889, 4294901760
      %1891 = vmatpush1.msra.mxu0 %v1890
      %v1892 = vand.u32 %v218, 4294901760
      %v1893 = vsub.f32 %v218, %v1892
      %v1894 = vand.u32 %v1893, 4294901760
      %v1895 = vsub.f32 %v1893, %v1894
      %v1896 = vand.u32 %v1895, 4294901760
      %1897 = vmatprep.subr.mxu0 %v1896
      %v1898 = vand.u32 %v217, 4294901760
      %v1899 = vsub.f32 %v217, %v1898
      %v1900 = vand.u32 %v1899, 4294901760
      %v1901 = vsub.f32 %v1899, %v1900
      %v1902 = vand.u32 %v1901, 4294901760
      %1903 = vmatpush1.msra.mxu0 %v1902
      %v1904 = vand.u32 %v216, 4294901760
      %v1905 = vsub.f32 %v216, %v1904
      %v1906 = vand.u32 %v1905, 4294901760
      %v1907 = vsub.f32 %v1905, %v1906
      %v1908 = vand.u32 %v1907, 4294901760
      %1909 = vmatprep.subr.mxu0 %v1908
      %v1910 = vand.u32 %v215, 4294901760
      %v1911 = vsub.f32 %v215, %v1910
      %v1912 = vand.u32 %v1911, 4294901760
      %v1913 = vsub.f32 %v1911, %v1912
      %v1914 = vand.u32 %v1913, 4294901760
      %1915 = vmatpush1.msra.mxu0 %v1914
      %v1916 = vand.u32 %v214, 4294901760
      %v1917 = vsub.f32 %v214, %v1916
      %v1918 = vand.u32 %v1917, 4294901760
      %v1919 = vsub.f32 %v1917, %v1918
      %v1920 = vand.u32 %v1919, 4294901760
      %1921 = vmatprep.subr.mxu0 %v1920
      %v1922 = vand.u32 %v213, 4294901760
      %v1923 = vsub.f32 %v213, %v1922
      %v1924 = vand.u32 %v1923, 4294901760
      %v1925 = vsub.f32 %v1923, %v1924
      %v1926 = vand.u32 %v1925, 4294901760
      %1927 = vmatpush1.msra.mxu0 %v1926
      %v1928 = vand.u32 %v212, 4294901760
      %v1929 = vsub.f32 %v212, %v1928
      %v1930 = vand.u32 %v1929, 4294901760
      %v1931 = vsub.f32 %v1929, %v1930
      %v1932 = vand.u32 %v1931, 4294901760
      %1933 = vmatprep.subr.mxu0 %v1932
      %v1934 = vand.u32 %v211, 4294901760
      %v1935 = vsub.f32 %v211, %v1934
      %v1936 = vand.u32 %v1935, 4294901760
      %v1937 = vsub.f32 %v1935, %v1936
      %v1938 = vand.u32 %v1937, 4294901760
      %1939 = vmatpush1.msra.mxu0 %v1938
      %v1940 = vand.u32 %v210, 4294901760
      %v1941 = vsub.f32 %v210, %v1940
      %v1942 = vand.u32 %v1941, 4294901760
      %v1943 = vsub.f32 %v1941, %v1942
      %v1944 = vand.u32 %v1943, 4294901760
      %1945 = vmatprep.subr.mxu0 %v1944
      %v1946 = vand.u32 %v209, 4294901760
      %v1947 = vsub.f32 %v209, %v1946
      %v1948 = vand.u32 %v1947, 4294901760
      %v1949 = vsub.f32 %v1947, %v1948
      %v1950 = vand.u32 %v1949, 4294901760
      %1951 = vmatpush1.msra.mxu0 %v1950
      %v1952 = vand.u32 %v208, 4294901760
      %v1953 = vsub.f32 %v208, %v1952
      %v1954 = vand.u32 %v1953, 4294901760
      %v1955 = vsub.f32 %v1953, %v1954
      %v1956 = vand.u32 %v1955, 4294901760
      %1957 = vmatprep.subr.mxu0 %v1956
      %v1958 = vand.u32 %v207, 4294901760
      %v1959 = vsub.f32 %v207, %v1958
      %v1960 = vand.u32 %v1959, 4294901760
      %v1961 = vsub.f32 %v1959, %v1960
      %v1962 = vand.u32 %v1961, 4294901760
      %1963 = vmatpush1.msra.mxu0 %v1962
      %v1964 = vand.u32 %v206, 4294901760
      %v1965 = vsub.f32 %v206, %v1964
      %v1966 = vand.u32 %v1965, 4294901760
      %v1967 = vsub.f32 %v1965, %v1966
      %v1968 = vand.u32 %v1967, 4294901760
      %1969 = vmatprep.subr.mxu0 %v1968
      %v1970 = vand.u32 %v205, 4294901760
      %v1971 = vsub.f32 %v205, %v1970
      %v1972 = vand.u32 %v1971, 4294901760
      %v1973 = vsub.f32 %v1971, %v1972
      %v1974 = vand.u32 %v1973, 4294901760
      %1975 = vmatpush1.msra.mxu0 %v1974
      %v1976 = vand.u32 %v268, 4294901760
      %v1977 = vsub.f32 %v268, %v1976
      %v1978 = vand.u32 %v1977, 4294901760
      %v1979 = vsub.f32 %v1977, %v1978
      %v1980 = vand.u32 %v1979, 4294901760
      %1981 = vmatprep.subr.mxu0 %v1980
      %v1982 = vand.u32 %v267, 4294901760
      %v1983 = vsub.f32 %v267, %v1982
      %v1984 = vand.u32 %v1983, 4294901760
      %v1985 = vsub.f32 %v1983, %v1984
      %v1986 = vand.u32 %v1985, 4294901760
      %1987 = vmatpush2.msra.mxu0 %v1986
      %v1988 = vand.u32 %v266, 4294901760
      %v1989 = vsub.f32 %v266, %v1988
      %v1990 = vand.u32 %v1989, 4294901760
      %v1991 = vsub.f32 %v1989, %v1990
      %v1992 = vand.u32 %v1991, 4294901760
      %1993 = vmatprep.subr.mxu0 %v1992
      %v1994 = vand.u32 %v265, 4294901760
      %v1995 = vsub.f32 %v265, %v1994
      %v1996 = vand.u32 %v1995, 4294901760
      %v1997 = vsub.f32 %v1995, %v1996
      %v1998 = vand.u32 %v1997, 4294901760
      %1999 = vmatpush2.msra.mxu0 %v1998
      %v2000 = vand.u32 %v264, 4294901760
      %v2001 = vsub.f32 %v264, %v2000
      %v2002 = vand.u32 %v2001, 4294901760
      %v2003 = vsub.f32 %v2001, %v2002
      %v2004 = vand.u32 %v2003, 4294901760
      %2005 = vmatprep.subr.mxu0 %v2004
      %v2006 = vand.u32 %v263, 4294901760
      %v2007 = vsub.f32 %v263, %v2006
      %v2008 = vand.u32 %v2007, 4294901760
      %v2009 = vsub.f32 %v2007, %v2008
      %v2010 = vand.u32 %v2009, 4294901760
      %2011 = vmatpush2.msra.mxu0 %v2010
      %v2012 = vand.u32 %v262, 4294901760
      %v2013 = vsub.f32 %v262, %v2012
      %v2014 = vand.u32 %v2013, 4294901760
      %v2015 = vsub.f32 %v2013, %v2014
      %v2016 = vand.u32 %v2015, 4294901760
      %2017 = vmatprep.subr.mxu0 %v2016
      %v2018 = vand.u32 %v261, 4294901760
      %v2019 = vsub.f32 %v261, %v2018
      %v2020 = vand.u32 %v2019, 4294901760
      %v2021 = vsub.f32 %v2019, %v2020
      %v2022 = vand.u32 %v2021, 4294901760
      %2023 = vmatpush2.msra.mxu0 %v2022
      %v2024 = vand.u32 %v260, 4294901760
      %v2025 = vsub.f32 %v260, %v2024
      %v2026 = vand.u32 %v2025, 4294901760
      %v2027 = vsub.f32 %v2025, %v2026
      %v2028 = vand.u32 %v2027, 4294901760
      %2029 = vmatprep.subr.mxu0 %v2028
      %v2030 = vand.u32 %v259, 4294901760
      %v2031 = vsub.f32 %v259, %v2030
      %v2032 = vand.u32 %v2031, 4294901760
      %v2033 = vsub.f32 %v2031, %v2032
      %v2034 = vand.u32 %v2033, 4294901760
      %2035 = vmatpush2.msra.mxu0 %v2034
      %v2036 = vand.u32 %v258, 4294901760
      %v2037 = vsub.f32 %v258, %v2036
      %v2038 = vand.u32 %v2037, 4294901760
      %v2039 = vsub.f32 %v2037, %v2038
      %v2040 = vand.u32 %v2039, 4294901760
      %2041 = vmatprep.subr.mxu0 %v2040
      %v2042 = vand.u32 %v257, 4294901760
      %v2043 = vsub.f32 %v257, %v2042
      %v2044 = vand.u32 %v2043, 4294901760
      %v2045 = vsub.f32 %v2043, %v2044
      %v2046 = vand.u32 %v2045, 4294901760
      %2047 = vmatpush2.msra.mxu0 %v2046
      %v2048 = vand.u32 %v256, 4294901760
      %v2049 = vsub.f32 %v256, %v2048
      %v2050 = vand.u32 %v2049, 4294901760
      %v2051 = vsub.f32 %v2049, %v2050
      %v2052 = vand.u32 %v2051, 4294901760
      %2053 = vmatprep.subr.mxu0 %v2052
      %v2054 = vand.u32 %v255, 4294901760
      %v2055 = vsub.f32 %v255, %v2054
      %v2056 = vand.u32 %v2055, 4294901760
      %v2057 = vsub.f32 %v2055, %v2056
      %v2058 = vand.u32 %v2057, 4294901760
      %2059 = vmatpush2.msra.mxu0 %v2058
      %v2060 = vand.u32 %v254, 4294901760
      %v2061 = vsub.f32 %v254, %v2060
      %v2062 = vand.u32 %v2061, 4294901760
      %v2063 = vsub.f32 %v2061, %v2062
      %v2064 = vand.u32 %v2063, 4294901760
      %2065 = vmatprep.subr.mxu0 %v2064
      %v2066 = vand.u32 %v253, 4294901760
      %v2067 = vsub.f32 %v253, %v2066
      %v2068 = vand.u32 %v2067, 4294901760
      %v2069 = vsub.f32 %v2067, %v2068
      %v2070 = vand.u32 %v2069, 4294901760
      %2071 = vmatpush2.msra.mxu0 %v2070
      %v2072 = vand.u32 %v252, 4294901760
      %v2073 = vsub.f32 %v252, %v2072
      %v2074 = vand.u32 %v2073, 4294901760
      %v2075 = vsub.f32 %v2073, %v2074
      %v2076 = vand.u32 %v2075, 4294901760
      %2077 = vmatprep.subr.mxu0 %v2076
      %v2078 = vand.u32 %v251, 4294901760
      %v2079 = vsub.f32 %v251, %v2078
      %v2080 = vand.u32 %v2079, 4294901760
      %v2081 = vsub.f32 %v2079, %v2080
      %v2082 = vand.u32 %v2081, 4294901760
      %2083 = vmatpush2.msra.mxu0 %v2082
      %v2084 = vand.u32 %v250, 4294901760
      %v2085 = vsub.f32 %v250, %v2084
      %v2086 = vand.u32 %v2085, 4294901760
      %v2087 = vsub.f32 %v2085, %v2086
      %v2088 = vand.u32 %v2087, 4294901760
      %2089 = vmatprep.subr.mxu0 %v2088
      %v2090 = vand.u32 %v249, 4294901760
      %v2091 = vsub.f32 %v249, %v2090
      %v2092 = vand.u32 %v2091, 4294901760
      %v2093 = vsub.f32 %v2091, %v2092
      %v2094 = vand.u32 %v2093, 4294901760
      %2095 = vmatpush2.msra.mxu0 %v2094
      %v2096 = vand.u32 %v248, 4294901760
      %v2097 = vsub.f32 %v248, %v2096
      %v2098 = vand.u32 %v2097, 4294901760
      %v2099 = vsub.f32 %v2097, %v2098
      %v2100 = vand.u32 %v2099, 4294901760
      %2101 = vmatprep.subr.mxu0 %v2100
      %v2102 = vand.u32 %v247, 4294901760
      %v2103 = vsub.f32 %v247, %v2102
      %v2104 = vand.u32 %v2103, 4294901760
      %v2105 = vsub.f32 %v2103, %v2104
      %v2106 = vand.u32 %v2105, 4294901760
      %2107 = vmatpush2.msra.mxu0 %v2106
      %v2108 = vand.u32 %v246, 4294901760
      %v2109 = vsub.f32 %v246, %v2108
      %v2110 = vand.u32 %v2109, 4294901760
      %v2111 = vsub.f32 %v2109, %v2110
      %v2112 = vand.u32 %v2111, 4294901760
      %2113 = vmatprep.subr.mxu0 %v2112
      %v2114 = vand.u32 %v245, 4294901760
      %v2115 = vsub.f32 %v245, %v2114
      %v2116 = vand.u32 %v2115, 4294901760
      %v2117 = vsub.f32 %v2115, %v2116
      %v2118 = vand.u32 %v2117, 4294901760
      %2119 = vmatpush2.msra.mxu0 %v2118
      %v2120 = vand.u32 %v244, 4294901760
      %v2121 = vsub.f32 %v244, %v2120
      %v2122 = vand.u32 %v2121, 4294901760
      %v2123 = vsub.f32 %v2121, %v2122
      %v2124 = vand.u32 %v2123, 4294901760
      %2125 = vmatprep.subr.mxu0 %v2124
      %v2126 = vand.u32 %v243, 4294901760
      %v2127 = vsub.f32 %v243, %v2126
      %v2128 = vand.u32 %v2127, 4294901760
      %v2129 = vsub.f32 %v2127, %v2128
      %v2130 = vand.u32 %v2129, 4294901760
      %2131 = vmatpush2.msra.mxu0 %v2130
      %v2132 = vand.u32 %v242, 4294901760
      %v2133 = vsub.f32 %v242, %v2132
      %v2134 = vand.u32 %v2133, 4294901760
      %v2135 = vsub.f32 %v2133, %v2134
      %v2136 = vand.u32 %v2135, 4294901760
      %2137 = vmatprep.subr.mxu0 %v2136
      %v2138 = vand.u32 %v241, 4294901760
      %v2139 = vsub.f32 %v241, %v2138
      %v2140 = vand.u32 %v2139, 4294901760
      %v2141 = vsub.f32 %v2139, %v2140
      %v2142 = vand.u32 %v2141, 4294901760
      %2143 = vmatpush2.msra.mxu0 %v2142
      %v2144 = vand.u32 %v240, 4294901760
      %v2145 = vsub.f32 %v240, %v2144
      %v2146 = vand.u32 %v2145, 4294901760
      %v2147 = vsub.f32 %v2145, %v2146
      %v2148 = vand.u32 %v2147, 4294901760
      %2149 = vmatprep.subr.mxu0 %v2148
      %v2150 = vand.u32 %v239, 4294901760
      %v2151 = vsub.f32 %v239, %v2150
      %v2152 = vand.u32 %v2151, 4294901760
      %v2153 = vsub.f32 %v2151, %v2152
      %v2154 = vand.u32 %v2153, 4294901760
      %2155 = vmatpush2.msra.mxu0 %v2154
      %v2156 = vand.u32 %v238, 4294901760
      %v2157 = vsub.f32 %v238, %v2156
      %v2158 = vand.u32 %v2157, 4294901760
      %v2159 = vsub.f32 %v2157, %v2158
      %v2160 = vand.u32 %v2159, 4294901760
      %2161 = vmatprep.subr.mxu0 %v2160
      %v2162 = vand.u32 %v237, 4294901760
      %v2163 = vsub.f32 %v237, %v2162
      %v2164 = vand.u32 %v2163, 4294901760
      %v2165 = vsub.f32 %v2163, %v2164
      %v2166 = vand.u32 %v2165, 4294901760
      %2167 = vmatpush2.msra.mxu0 %v2166
      %v2168 = vand.u32 %v1636, 4294901760
      %2169 = vmatprep.mubr.f32.mxu0 %v2168
      %v2170 = vand.u32 %v1635, 4294901760
      %2171 = vmatmul.mubr.f32.gmra.mxu0 %v2170
      %v2172 = vpop.f32.mrf.mxu0
      %v2173 = vadd.f32 %v1780, %v2172
      %v2174 = vpop.f32.mrf.mxu0
      %v2175 = vadd.f32 %v1782, %v2174
      %2176 = vdwg.mxu0
      %v2177 = vand.u32 %v236, 4294901760
      %v2178 = vsub.f32 %v236, %v2177
      %2179 = vmatprep.subr.mxu0 %v2178
      %v2180 = vand.u32 %v235, 4294901760
      %v2181 = vsub.f32 %v235, %v2180
      %2182 = vmatpush1.msra.mxu0 %v2181
      %v2183 = vand.u32 %v234, 4294901760
      %v2184 = vsub.f32 %v234, %v2183
      %2185 = vmatprep.subr.mxu0 %v2184
      %v2186 = vand.u32 %v233, 4294901760
      %v2187 = vsub.f32 %v233, %v2186
      %2188 = vmatpush1.msra.mxu0 %v2187
      %v2189 = vand.u32 %v232, 4294901760
      %v2190 = vsub.f32 %v232, %v2189
      %2191 = vmatprep.subr.mxu0 %v2190
      %v2192 = vand.u32 %v231, 4294901760
      %v2193 = vsub.f32 %v231, %v2192
      %2194 = vmatpush1.msra.mxu0 %v2193
      %v2195 = vand.u32 %v230, 4294901760
      %v2196 = vsub.f32 %v230, %v2195
      %2197 = vmatprep.subr.mxu0 %v2196
      %v2198 = vand.u32 %v229, 4294901760
      %v2199 = vsub.f32 %v229, %v2198
      %2200 = vmatpush1.msra.mxu0 %v2199
      %v2201 = vand.u32 %v228, 4294901760
      %v2202 = vsub.f32 %v228, %v2201
      %2203 = vmatprep.subr.mxu0 %v2202
      %v2204 = vand.u32 %v227, 4294901760
      %v2205 = vsub.f32 %v227, %v2204
      %2206 = vmatpush1.msra.mxu0 %v2205
      %v2207 = vand.u32 %v226, 4294901760
      %v2208 = vsub.f32 %v226, %v2207
      %2209 = vmatprep.subr.mxu0 %v2208
      %v2210 = vand.u32 %v225, 4294901760
      %v2211 = vsub.f32 %v225, %v2210
      %2212 = vmatpush1.msra.mxu0 %v2211
      %v2213 = vand.u32 %v224, 4294901760
      %v2214 = vsub.f32 %v224, %v2213
      %2215 = vmatprep.subr.mxu0 %v2214
      %v2216 = vand.u32 %v223, 4294901760
      %v2217 = vsub.f32 %v223, %v2216
      %2218 = vmatpush1.msra.mxu0 %v2217
      %v2219 = vand.u32 %v222, 4294901760
      %v2220 = vsub.f32 %v222, %v2219
      %2221 = vmatprep.subr.mxu0 %v2220
      %v2222 = vand.u32 %v221, 4294901760
      %v2223 = vsub.f32 %v221, %v2222
      %2224 = vmatpush1.msra.mxu0 %v2223
      %v2225 = vand.u32 %v220, 4294901760
      %v2226 = vsub.f32 %v220, %v2225
      %2227 = vmatprep.subr.mxu0 %v2226
      %v2228 = vand.u32 %v219, 4294901760
      %v2229 = vsub.f32 %v219, %v2228
      %2230 = vmatpush1.msra.mxu0 %v2229
      %v2231 = vand.u32 %v218, 4294901760
      %v2232 = vsub.f32 %v218, %v2231
      %2233 = vmatprep.subr.mxu0 %v2232
      %v2234 = vand.u32 %v217, 4294901760
      %v2235 = vsub.f32 %v217, %v2234
      %2236 = vmatpush1.msra.mxu0 %v2235
      %v2237 = vand.u32 %v216, 4294901760
      %v2238 = vsub.f32 %v216, %v2237
      %2239 = vmatprep.subr.mxu0 %v2238
      %v2240 = vand.u32 %v215, 4294901760
      %v2241 = vsub.f32 %v215, %v2240
      %2242 = vmatpush1.msra.mxu0 %v2241
      %v2243 = vand.u32 %v214, 4294901760
      %v2244 = vsub.f32 %v214, %v2243
      %2245 = vmatprep.subr.mxu0 %v2244
      %v2246 = vand.u32 %v213, 4294901760
      %v2247 = vsub.f32 %v213, %v2246
      %2248 = vmatpush1.msra.mxu0 %v2247
      %v2249 = vand.u32 %v212, 4294901760
      %v2250 = vsub.f32 %v212, %v2249
      %2251 = vmatprep.subr.mxu0 %v2250
      %v2252 = vand.u32 %v211, 4294901760
      %v2253 = vsub.f32 %v211, %v2252
      %2254 = vmatpush1.msra.mxu0 %v2253
      %v2255 = vand.u32 %v210, 4294901760
      %v2256 = vsub.f32 %v210, %v2255
      %2257 = vmatprep.subr.mxu0 %v2256
      %v2258 = vand.u32 %v209, 4294901760
      %v2259 = vsub.f32 %v209, %v2258
      %2260 = vmatpush1.msra.mxu0 %v2259
      %v2261 = vand.u32 %v208, 4294901760
      %v2262 = vsub.f32 %v208, %v2261
      %2263 = vmatprep.subr.mxu0 %v2262
      %v2264 = vand.u32 %v207, 4294901760
      %v2265 = vsub.f32 %v207, %v2264
      %2266 = vmatpush1.msra.mxu0 %v2265
      %v2267 = vand.u32 %v206, 4294901760
      %v2268 = vsub.f32 %v206, %v2267
      %2269 = vmatprep.subr.mxu0 %v2268
      %v2270 = vand.u32 %v205, 4294901760
      %v2271 = vsub.f32 %v205, %v2270
      %2272 = vmatpush1.msra.mxu0 %v2271
      %v2273 = vand.u32 %v268, 4294901760
      %v2274 = vsub.f32 %v268, %v2273
      %2275 = vmatprep.subr.mxu0 %v2274
      %v2276 = vand.u32 %v267, 4294901760
      %v2277 = vsub.f32 %v267, %v2276
      %2278 = vmatpush2.msra.mxu0 %v2277
      %v2279 = vand.u32 %v266, 4294901760
      %v2280 = vsub.f32 %v266, %v2279
      %2281 = vmatprep.subr.mxu0 %v2280
      %v2282 = vand.u32 %v265, 4294901760
      %v2283 = vsub.f32 %v265, %v2282
      %2284 = vmatpush2.msra.mxu0 %v2283
      %v2285 = vand.u32 %v264, 4294901760
      %v2286 = vsub.f32 %v264, %v2285
      %2287 = vmatprep.subr.mxu0 %v2286
      %v2288 = vand.u32 %v263, 4294901760
      %v2289 = vsub.f32 %v263, %v2288
      %2290 = vmatpush2.msra.mxu0 %v2289
      %v2291 = vand.u32 %v262, 4294901760
      %v2292 = vsub.f32 %v262, %v2291
      %2293 = vmatprep.subr.mxu0 %v2292
      %v2294 = vand.u32 %v261, 4294901760
      %v2295 = vsub.f32 %v261, %v2294
      %2296 = vmatpush2.msra.mxu0 %v2295
      %v2297 = vand.u32 %v260, 4294901760
      %v2298 = vsub.f32 %v260, %v2297
      %2299 = vmatprep.subr.mxu0 %v2298
      %v2300 = vand.u32 %v259, 4294901760
      %v2301 = vsub.f32 %v259, %v2300
      %2302 = vmatpush2.msra.mxu0 %v2301
      %v2303 = vand.u32 %v258, 4294901760
      %v2304 = vsub.f32 %v258, %v2303
      %2305 = vmatprep.subr.mxu0 %v2304
      %v2306 = vand.u32 %v257, 4294901760
      %v2307 = vsub.f32 %v257, %v2306
      %2308 = vmatpush2.msra.mxu0 %v2307
      %v2309 = vand.u32 %v256, 4294901760
      %v2310 = vsub.f32 %v256, %v2309
      %2311 = vmatprep.subr.mxu0 %v2310
      %v2312 = vand.u32 %v255, 4294901760
      %v2313 = vsub.f32 %v255, %v2312
      %2314 = vmatpush2.msra.mxu0 %v2313
      %v2315 = vand.u32 %v254, 4294901760
      %v2316 = vsub.f32 %v254, %v2315
      %2317 = vmatprep.subr.mxu0 %v2316
      %v2318 = vand.u32 %v253, 4294901760
      %v2319 = vsub.f32 %v253, %v2318
      %2320 = vmatpush2.msra.mxu0 %v2319
      %v2321 = vand.u32 %v252, 4294901760
      %v2322 = vsub.f32 %v252, %v2321
      %2323 = vmatprep.subr.mxu0 %v2322
      %v2324 = vand.u32 %v251, 4294901760
      %v2325 = vsub.f32 %v251, %v2324
      %2326 = vmatpush2.msra.mxu0 %v2325
      %v2327 = vand.u32 %v250, 4294901760
      %v2328 = vsub.f32 %v250, %v2327
      %2329 = vmatprep.subr.mxu0 %v2328
      %v2330 = vand.u32 %v249, 4294901760
      %v2331 = vsub.f32 %v249, %v2330
      %2332 = vmatpush2.msra.mxu0 %v2331
      %v2333 = vand.u32 %v248, 4294901760
      %v2334 = vsub.f32 %v248, %v2333
      %2335 = vmatprep.subr.mxu0 %v2334
      %v2336 = vand.u32 %v247, 4294901760
      %v2337 = vsub.f32 %v247, %v2336
      %2338 = vmatpush2.msra.mxu0 %v2337
      %v2339 = vand.u32 %v246, 4294901760
      %v2340 = vsub.f32 %v246, %v2339
      %2341 = vmatprep.subr.mxu0 %v2340
      %v2342 = vand.u32 %v245, 4294901760
      %v2343 = vsub.f32 %v245, %v2342
      %2344 = vmatpush2.msra.mxu0 %v2343
      %v2345 = vand.u32 %v244, 4294901760
      %v2346 = vsub.f32 %v244, %v2345
      %2347 = vmatprep.subr.mxu0 %v2346
      %v2348 = vand.u32 %v243, 4294901760
      %v2349 = vsub.f32 %v243, %v2348
      %2350 = vmatpush2.msra.mxu0 %v2349
      %v2351 = vand.u32 %v242, 4294901760
      %v2352 = vsub.f32 %v242, %v2351
      %2353 = vmatprep.subr.mxu0 %v2352
      %v2354 = vand.u32 %v241, 4294901760
      %v2355 = vsub.f32 %v241, %v2354
      %2356 = vmatpush2.msra.mxu0 %v2355
      %v2357 = vand.u32 %v240, 4294901760
      %v2358 = vsub.f32 %v240, %v2357
      %2359 = vmatprep.subr.mxu0 %v2358
      %v2360 = vand.u32 %v239, 4294901760
      %v2361 = vsub.f32 %v239, %v2360
      %2362 = vmatpush2.msra.mxu0 %v2361
      %v2363 = vand.u32 %v238, 4294901760
      %v2364 = vsub.f32 %v238, %v2363
      %2365 = vmatprep.subr.mxu0 %v2364
      %v2366 = vand.u32 %v237, 4294901760
      %v2367 = vsub.f32 %v237, %v2366
      %2368 = vmatpush2.msra.mxu0 %v2367
      %v2369 = vand.u32 %v1636, 4294901760
      %v2370 = vsub.f32 %v1636, %v2369
      %2371 = vmatprep.mubr.f32.mxu0 %v2370
      %v2372 = vand.u32 %v1635, 4294901760
      %v2373 = vsub.f32 %v1635, %v2372
      %2374 = vmatmul.mubr.f32.gmra.mxu0 %v2373
      %v2375 = vpop.f32.mrf.mxu0
      %v2376 = vadd.f32 %v2173, %v2375
      %v2377 = vpop.f32.mrf.mxu0
      %v2378 = vadd.f32 %v2175, %v2377
      %2379 = vdwg.mxu0
      %v2380 = vand.u32 %v236, 4294901760
      %2381 = vmatprep.subr.mxu0 %v2380
      %v2382 = vand.u32 %v235, 4294901760
      %2383 = vmatpush1.msra.mxu0 %v2382
      %v2384 = vand.u32 %v234, 4294901760
      %2385 = vmatprep.subr.mxu0 %v2384
      %v2386 = vand.u32 %v233, 4294901760
      %2387 = vmatpush1.msra.mxu0 %v2386
      %v2388 = vand.u32 %v232, 4294901760
      %2389 = vmatprep.subr.mxu0 %v2388
      %v2390 = vand.u32 %v231, 4294901760
      %2391 = vmatpush1.msra.mxu0 %v2390
      %v2392 = vand.u32 %v230, 4294901760
      %2393 = vmatprep.subr.mxu0 %v2392
      %v2394 = vand.u32 %v229, 4294901760
      %2395 = vmatpush1.msra.mxu0 %v2394
      %v2396 = vand.u32 %v228, 4294901760
      %2397 = vmatprep.subr.mxu0 %v2396
      %v2398 = vand.u32 %v227, 4294901760
      %2399 = vmatpush1.msra.mxu0 %v2398
      %v2400 = vand.u32 %v226, 4294901760
      %2401 = vmatprep.subr.mxu0 %v2400
      %v2402 = vand.u32 %v225, 4294901760
      %2403 = vmatpush1.msra.mxu0 %v2402
      %v2404 = vand.u32 %v224, 4294901760
      %2405 = vmatprep.subr.mxu0 %v2404
      %v2406 = vand.u32 %v223, 4294901760
      %2407 = vmatpush1.msra.mxu0 %v2406
      %v2408 = vand.u32 %v222, 4294901760
      %2409 = vmatprep.subr.mxu0 %v2408
      %v2410 = vand.u32 %v221, 4294901760
      %2411 = vmatpush1.msra.mxu0 %v2410
      %v2412 = vand.u32 %v220, 4294901760
      %2413 = vmatprep.subr.mxu0 %v2412
      %v2414 = vand.u32 %v219, 4294901760
      %2415 = vmatpush1.msra.mxu0 %v2414
      %v2416 = vand.u32 %v218, 4294901760
      %2417 = vmatprep.subr.mxu0 %v2416
      %v2418 = vand.u32 %v217, 4294901760
      %2419 = vmatpush1.msra.mxu0 %v2418
      %v2420 = vand.u32 %v216, 4294901760
      %2421 = vmatprep.subr.mxu0 %v2420
      %v2422 = vand.u32 %v215, 4294901760
      %2423 = vmatpush1.msra.mxu0 %v2422
      %v2424 = vand.u32 %v214, 4294901760
      %2425 = vmatprep.subr.mxu0 %v2424
      %v2426 = vand.u32 %v213, 4294901760
      %2427 = vmatpush1.msra.mxu0 %v2426
      %v2428 = vand.u32 %v212, 4294901760
      %2429 = vmatprep.subr.mxu0 %v2428
      %v2430 = vand.u32 %v211, 4294901760
      %2431 = vmatpush1.msra.mxu0 %v2430
      %v2432 = vand.u32 %v210, 4294901760
      %2433 = vmatprep.subr.mxu0 %v2432
      %v2434 = vand.u32 %v209, 4294901760
      %2435 = vmatpush1.msra.mxu0 %v2434
      %v2436 = vand.u32 %v208, 4294901760
      %2437 = vmatprep.subr.mxu0 %v2436
      %v2438 = vand.u32 %v207, 4294901760
      %2439 = vmatpush1.msra.mxu0 %v2438
      %v2440 = vand.u32 %v206, 4294901760
      %2441 = vmatprep.subr.mxu0 %v2440
      %v2442 = vand.u32 %v205, 4294901760
      %2443 = vmatpush1.msra.mxu0 %v2442
      %v2444 = vand.u32 %v268, 4294901760
      %2445 = vmatprep.subr.mxu0 %v2444
      %v2446 = vand.u32 %v267, 4294901760
      %2447 = vmatpush2.msra.mxu0 %v2446
      %v2448 = vand.u32 %v266, 4294901760
      %2449 = vmatprep.subr.mxu0 %v2448
      %v2450 = vand.u32 %v265, 4294901760
      %2451 = vmatpush2.msra.mxu0 %v2450
      %v2452 = vand.u32 %v264, 4294901760
      %2453 = vmatprep.subr.mxu0 %v2452
      %v2454 = vand.u32 %v263, 4294901760
      %2455 = vmatpush2.msra.mxu0 %v2454
      %v2456 = vand.u32 %v262, 4294901760
      %2457 = vmatprep.subr.mxu0 %v2456
      %v2458 = vand.u32 %v261, 4294901760
      %2459 = vmatpush2.msra.mxu0 %v2458
      %v2460 = vand.u32 %v260, 4294901760
      %2461 = vmatprep.subr.mxu0 %v2460
      %v2462 = vand.u32 %v259, 4294901760
      %2463 = vmatpush2.msra.mxu0 %v2462
      %v2464 = vand.u32 %v258, 4294901760
      %2465 = vmatprep.subr.mxu0 %v2464
      %v2466 = vand.u32 %v257, 4294901760
      %2467 = vmatpush2.msra.mxu0 %v2466
      %v2468 = vand.u32 %v256, 4294901760
      %2469 = vmatprep.subr.mxu0 %v2468
      %v2470 = vand.u32 %v255, 4294901760
      %2471 = vmatpush2.msra.mxu0 %v2470
      %v2472 = vand.u32 %v254, 4294901760
      %2473 = vmatprep.subr.mxu0 %v2472
      %v2474 = vand.u32 %v253, 4294901760
      %2475 = vmatpush2.msra.mxu0 %v2474
      %v2476 = vand.u32 %v252, 4294901760
      %2477 = vmatprep.subr.mxu0 %v2476
      %v2478 = vand.u32 %v251, 4294901760
      %2479 = vmatpush2.msra.mxu0 %v2478
      %v2480 = vand.u32 %v250, 4294901760
      %2481 = vmatprep.subr.mxu0 %v2480
      %v2482 = vand.u32 %v249, 4294901760
      %2483 = vmatpush2.msra.mxu0 %v2482
      %v2484 = vand.u32 %v248, 4294901760
      %2485 = vmatprep.subr.mxu0 %v2484
      %v2486 = vand.u32 %v247, 4294901760
      %2487 = vmatpush2.msra.mxu0 %v2486
      %v2488 = vand.u32 %v246, 4294901760
      %2489 = vmatprep.subr.mxu0 %v2488
      %v2490 = vand.u32 %v245, 4294901760
      %2491 = vmatpush2.msra.mxu0 %v2490
      %v2492 = vand.u32 %v244, 4294901760
      %2493 = vmatprep.subr.mxu0 %v2492
      %v2494 = vand.u32 %v243, 4294901760
      %2495 = vmatpush2.msra.mxu0 %v2494
      %v2496 = vand.u32 %v242, 4294901760
      %2497 = vmatprep.subr.mxu0 %v2496
      %v2498 = vand.u32 %v241, 4294901760
      %2499 = vmatpush2.msra.mxu0 %v2498
      %v2500 = vand.u32 %v240, 4294901760
      %2501 = vmatprep.subr.mxu0 %v2500
      %v2502 = vand.u32 %v239, 4294901760
      %2503 = vmatpush2.msra.mxu0 %v2502
      %v2504 = vand.u32 %v238, 4294901760
      %2505 = vmatprep.subr.mxu0 %v2504
      %v2506 = vand.u32 %v237, 4294901760
      %2507 = vmatpush2.msra.mxu0 %v2506
      %v2508 = vand.u32 %v1636, 4294901760
      %v2509 = vsub.f32 %v1636, %v2508
      %v2510 = vand.u32 %v2509, 4294901760
      %2511 = vmatprep.mubr.f32.mxu0 %v2510
      %v2512 = vand.u32 %v1635, 4294901760
      %v2513 = vsub.f32 %v1635, %v2512
      %v2514 = vand.u32 %v2513, 4294901760
      %2515 = vmatmul.mubr.f32.gmra.mxu0 %v2514
      %v2516 = vpop.f32.mrf.mxu0
      %v2517 = vadd.f32 %v2376, %v2516
      %v2518 = vpop.f32.mrf.mxu0
      %v2519 = vadd.f32 %v2378, %v2518
      %2520 = vdwg.mxu0
      %v2521 = vand.u32 %v236, 4294901760
      %v2522 = vsub.f32 %v236, %v2521
      %v2523 = vand.u32 %v2522, 4294901760
      %2524 = vmatprep.subr.mxu0 %v2523
      %v2525 = vand.u32 %v235, 4294901760
      %v2526 = vsub.f32 %v235, %v2525
      %v2527 = vand.u32 %v2526, 4294901760
      %2528 = vmatpush1.msra.mxu0 %v2527
      %v2529 = vand.u32 %v234, 4294901760
      %v2530 = vsub.f32 %v234, %v2529
      %v2531 = vand.u32 %v2530, 4294901760
      %2532 = vmatprep.subr.mxu0 %v2531
      %v2533 = vand.u32 %v233, 4294901760
      %v2534 = vsub.f32 %v233, %v2533
      %v2535 = vand.u32 %v2534, 4294901760
      %2536 = vmatpush1.msra.mxu0 %v2535
      %v2537 = vand.u32 %v232, 4294901760
      %v2538 = vsub.f32 %v232, %v2537
      %v2539 = vand.u32 %v2538, 4294901760
      %2540 = vmatprep.subr.mxu0 %v2539
      %v2541 = vand.u32 %v231, 4294901760
      %v2542 = vsub.f32 %v231, %v2541
      %v2543 = vand.u32 %v2542, 4294901760
      %2544 = vmatpush1.msra.mxu0 %v2543
      %v2545 = vand.u32 %v230, 4294901760
      %v2546 = vsub.f32 %v230, %v2545
      %v2547 = vand.u32 %v2546, 4294901760
      %2548 = vmatprep.subr.mxu0 %v2547
      %v2549 = vand.u32 %v229, 4294901760
      %v2550 = vsub.f32 %v229, %v2549
      %v2551 = vand.u32 %v2550, 4294901760
      %2552 = vmatpush1.msra.mxu0 %v2551
      %v2553 = vand.u32 %v228, 4294901760
      %v2554 = vsub.f32 %v228, %v2553
      %v2555 = vand.u32 %v2554, 4294901760
      %2556 = vmatprep.subr.mxu0 %v2555
      %v2557 = vand.u32 %v227, 4294901760
      %v2558 = vsub.f32 %v227, %v2557
      %v2559 = vand.u32 %v2558, 4294901760
      %2560 = vmatpush1.msra.mxu0 %v2559
      %v2561 = vand.u32 %v226, 4294901760
      %v2562 = vsub.f32 %v226, %v2561
      %v2563 = vand.u32 %v2562, 4294901760
      %2564 = vmatprep.subr.mxu0 %v2563
      %v2565 = vand.u32 %v225, 4294901760
      %v2566 = vsub.f32 %v225, %v2565
      %v2567 = vand.u32 %v2566, 4294901760
      %2568 = vmatpush1.msra.mxu0 %v2567
      %v2569 = vand.u32 %v224, 4294901760
      %v2570 = vsub.f32 %v224, %v2569
      %v2571 = vand.u32 %v2570, 4294901760
      %2572 = vmatprep.subr.mxu0 %v2571
      %v2573 = vand.u32 %v223, 4294901760
      %v2574 = vsub.f32 %v223, %v2573
      %v2575 = vand.u32 %v2574, 4294901760
      %2576 = vmatpush1.msra.mxu0 %v2575
      %v2577 = vand.u32 %v222, 4294901760
      %v2578 = vsub.f32 %v222, %v2577
      %v2579 = vand.u32 %v2578, 4294901760
      %2580 = vmatprep.subr.mxu0 %v2579
      %v2581 = vand.u32 %v221, 4294901760
      %v2582 = vsub.f32 %v221, %v2581
      %v2583 = vand.u32 %v2582, 4294901760
      %2584 = vmatpush1.msra.mxu0 %v2583
      %v2585 = vand.u32 %v220, 4294901760
      %v2586 = vsub.f32 %v220, %v2585
      %v2587 = vand.u32 %v2586, 4294901760
      %2588 = vmatprep.subr.mxu0 %v2587
      %v2589 = vand.u32 %v219, 4294901760
      %v2590 = vsub.f32 %v219, %v2589
      %v2591 = vand.u32 %v2590, 4294901760
      %2592 = vmatpush1.msra.mxu0 %v2591
      %v2593 = vand.u32 %v218, 4294901760
      %v2594 = vsub.f32 %v218, %v2593
      %v2595 = vand.u32 %v2594, 4294901760
      %2596 = vmatprep.subr.mxu0 %v2595
      %v2597 = vand.u32 %v217, 4294901760
      %v2598 = vsub.f32 %v217, %v2597
      %v2599 = vand.u32 %v2598, 4294901760
      %2600 = vmatpush1.msra.mxu0 %v2599
      %v2601 = vand.u32 %v216, 4294901760
      %v2602 = vsub.f32 %v216, %v2601
      %v2603 = vand.u32 %v2602, 4294901760
      %2604 = vmatprep.subr.mxu0 %v2603
      %v2605 = vand.u32 %v215, 4294901760
      %v2606 = vsub.f32 %v215, %v2605
      %v2607 = vand.u32 %v2606, 4294901760
      %2608 = vmatpush1.msra.mxu0 %v2607
      %v2609 = vand.u32 %v214, 4294901760
      %v2610 = vsub.f32 %v214, %v2609
      %v2611 = vand.u32 %v2610, 4294901760
      %2612 = vmatprep.subr.mxu0 %v2611
      %v2613 = vand.u32 %v213, 4294901760
      %v2614 = vsub.f32 %v213, %v2613
      %v2615 = vand.u32 %v2614, 4294901760
      %2616 = vmatpush1.msra.mxu0 %v2615
      %v2617 = vand.u32 %v212, 4294901760
      %v2618 = vsub.f32 %v212, %v2617
      %v2619 = vand.u32 %v2618, 4294901760
      %2620 = vmatprep.subr.mxu0 %v2619
      %v2621 = vand.u32 %v211, 4294901760
      %v2622 = vsub.f32 %v211, %v2621
      %v2623 = vand.u32 %v2622, 4294901760
      %2624 = vmatpush1.msra.mxu0 %v2623
      %v2625 = vand.u32 %v210, 4294901760
      %v2626 = vsub.f32 %v210, %v2625
      %v2627 = vand.u32 %v2626, 4294901760
      %2628 = vmatprep.subr.mxu0 %v2627
      %v2629 = vand.u32 %v209, 4294901760
      %v2630 = vsub.f32 %v209, %v2629
      %v2631 = vand.u32 %v2630, 4294901760
      %2632 = vmatpush1.msra.mxu0 %v2631
      %v2633 = vand.u32 %v208, 4294901760
      %v2634 = vsub.f32 %v208, %v2633
      %v2635 = vand.u32 %v2634, 4294901760
      %2636 = vmatprep.subr.mxu0 %v2635
      %v2637 = vand.u32 %v207, 4294901760
      %v2638 = vsub.f32 %v207, %v2637
      %v2639 = vand.u32 %v2638, 4294901760
      %2640 = vmatpush1.msra.mxu0 %v2639
      %v2641 = vand.u32 %v206, 4294901760
      %v2642 = vsub.f32 %v206, %v2641
      %v2643 = vand.u32 %v2642, 4294901760
      %2644 = vmatprep.subr.mxu0 %v2643
      %v2645 = vand.u32 %v205, 4294901760
      %v2646 = vsub.f32 %v205, %v2645
      %v2647 = vand.u32 %v2646, 4294901760
      %2648 = vmatpush1.msra.mxu0 %v2647
      %v2649 = vand.u32 %v268, 4294901760
      %v2650 = vsub.f32 %v268, %v2649
      %v2651 = vand.u32 %v2650, 4294901760
      %2652 = vmatprep.subr.mxu0 %v2651
      %v2653 = vand.u32 %v267, 4294901760
      %v2654 = vsub.f32 %v267, %v2653
      %v2655 = vand.u32 %v2654, 4294901760
      %2656 = vmatpush2.msra.mxu0 %v2655
      %v2657 = vand.u32 %v266, 4294901760
      %v2658 = vsub.f32 %v266, %v2657
      %v2659 = vand.u32 %v2658, 4294901760
      %2660 = vmatprep.subr.mxu0 %v2659
      %v2661 = vand.u32 %v265, 4294901760
      %v2662 = vsub.f32 %v265, %v2661
      %v2663 = vand.u32 %v2662, 4294901760
      %2664 = vmatpush2.msra.mxu0 %v2663
      %v2665 = vand.u32 %v264, 4294901760
      %v2666 = vsub.f32 %v264, %v2665
      %v2667 = vand.u32 %v2666, 4294901760
      %2668 = vmatprep.subr.mxu0 %v2667
      %v2669 = vand.u32 %v263, 4294901760
      %v2670 = vsub.f32 %v263, %v2669
      %v2671 = vand.u32 %v2670, 4294901760
      %2672 = vmatpush2.msra.mxu0 %v2671
      %v2673 = vand.u32 %v262, 4294901760
      %v2674 = vsub.f32 %v262, %v2673
      %v2675 = vand.u32 %v2674, 4294901760
      %2676 = vmatprep.subr.mxu0 %v2675
      %v2677 = vand.u32 %v261, 4294901760
      %v2678 = vsub.f32 %v261, %v2677
      %v2679 = vand.u32 %v2678, 4294901760
      %2680 = vmatpush2.msra.mxu0 %v2679
      %v2681 = vand.u32 %v260, 4294901760
      %v2682 = vsub.f32 %v260, %v2681
      %v2683 = vand.u32 %v2682, 4294901760
      %2684 = vmatprep.subr.mxu0 %v2683
      %v2685 = vand.u32 %v259, 4294901760
      %v2686 = vsub.f32 %v259, %v2685
      %v2687 = vand.u32 %v2686, 4294901760
      %2688 = vmatpush2.msra.mxu0 %v2687
      %v2689 = vand.u32 %v258, 4294901760
      %v2690 = vsub.f32 %v258, %v2689
      %v2691 = vand.u32 %v2690, 4294901760
      %2692 = vmatprep.subr.mxu0 %v2691
      %v2693 = vand.u32 %v257, 4294901760
      %v2694 = vsub.f32 %v257, %v2693
      %v2695 = vand.u32 %v2694, 4294901760
      %2696 = vmatpush2.msra.mxu0 %v2695
      %v2697 = vand.u32 %v256, 4294901760
      %v2698 = vsub.f32 %v256, %v2697
      %v2699 = vand.u32 %v2698, 4294901760
      %2700 = vmatprep.subr.mxu0 %v2699
      %v2701 = vand.u32 %v255, 4294901760
      %v2702 = vsub.f32 %v255, %v2701
      %v2703 = vand.u32 %v2702, 4294901760
      %2704 = vmatpush2.msra.mxu0 %v2703
      %v2705 = vand.u32 %v254, 4294901760
      %v2706 = vsub.f32 %v254, %v2705
      %v2707 = vand.u32 %v2706, 4294901760
      %2708 = vmatprep.subr.mxu0 %v2707
      %v2709 = vand.u32 %v253, 4294901760
      %v2710 = vsub.f32 %v253, %v2709
      %v2711 = vand.u32 %v2710, 4294901760
      %2712 = vmatpush2.msra.mxu0 %v2711
      %v2713 = vand.u32 %v252, 4294901760
      %v2714 = vsub.f32 %v252, %v2713
      %v2715 = vand.u32 %v2714, 4294901760
      %2716 = vmatprep.subr.mxu0 %v2715
      %v2717 = vand.u32 %v251, 4294901760
      %v2718 = vsub.f32 %v251, %v2717
      %v2719 = vand.u32 %v2718, 4294901760
      %2720 = vmatpush2.msra.mxu0 %v2719
      %v2721 = vand.u32 %v250, 4294901760
      %v2722 = vsub.f32 %v250, %v2721
      %v2723 = vand.u32 %v2722, 4294901760
      %2724 = vmatprep.subr.mxu0 %v2723
      %v2725 = vand.u32 %v249, 4294901760
      %v2726 = vsub.f32 %v249, %v2725
      %v2727 = vand.u32 %v2726, 4294901760
      %2728 = vmatpush2.msra.mxu0 %v2727
      %v2729 = vand.u32 %v248, 4294901760
      %v2730 = vsub.f32 %v248, %v2729
      %v2731 = vand.u32 %v2730, 4294901760
      %2732 = vmatprep.subr.mxu0 %v2731
      %v2733 = vand.u32 %v247, 4294901760
      %v2734 = vsub.f32 %v247, %v2733
      %v2735 = vand.u32 %v2734, 4294901760
      %2736 = vmatpush2.msra.mxu0 %v2735
      %v2737 = vand.u32 %v246, 4294901760
      %v2738 = vsub.f32 %v246, %v2737
      %v2739 = vand.u32 %v2738, 4294901760
      %2740 = vmatprep.subr.mxu0 %v2739
      %v2741 = vand.u32 %v245, 4294901760
      %v2742 = vsub.f32 %v245, %v2741
      %v2743 = vand.u32 %v2742, 4294901760
      %2744 = vmatpush2.msra.mxu0 %v2743
      %v2745 = vand.u32 %v244, 4294901760
      %v2746 = vsub.f32 %v244, %v2745
      %v2747 = vand.u32 %v2746, 4294901760
      %2748 = vmatprep.subr.mxu0 %v2747
      %v2749 = vand.u32 %v243, 4294901760
      %v2750 = vsub.f32 %v243, %v2749
      %v2751 = vand.u32 %v2750, 4294901760
      %2752 = vmatpush2.msra.mxu0 %v2751
      %v2753 = vand.u32 %v242, 4294901760
      %v2754 = vsub.f32 %v242, %v2753
      %v2755 = vand.u32 %v2754, 4294901760
      %2756 = vmatprep.subr.mxu0 %v2755
      %v2757 = vand.u32 %v241, 4294901760
      %v2758 = vsub.f32 %v241, %v2757
      %v2759 = vand.u32 %v2758, 4294901760
      %2760 = vmatpush2.msra.mxu0 %v2759
      %v2761 = vand.u32 %v240, 4294901760
      %v2762 = vsub.f32 %v240, %v2761
      %v2763 = vand.u32 %v2762, 4294901760
      %2764 = vmatprep.subr.mxu0 %v2763
      %v2765 = vand.u32 %v239, 4294901760
      %v2766 = vsub.f32 %v239, %v2765
      %v2767 = vand.u32 %v2766, 4294901760
      %2768 = vmatpush2.msra.mxu0 %v2767
      %v2769 = vand.u32 %v238, 4294901760
      %v2770 = vsub.f32 %v238, %v2769
      %v2771 = vand.u32 %v2770, 4294901760
      %2772 = vmatprep.subr.mxu0 %v2771
      %v2773 = vand.u32 %v237, 4294901760
      %v2774 = vsub.f32 %v237, %v2773
      %v2775 = vand.u32 %v2774, 4294901760
      %2776 = vmatpush2.msra.mxu0 %v2775
      %v2777 = vand.u32 %v1636, 4294901760
      %2778 = vmatprep.mubr.f32.mxu0 %v2777
      %v2779 = vand.u32 %v1635, 4294901760
      %2780 = vmatmul.mubr.f32.gmra.mxu0 %v2779
      %v2781 = vpop.f32.mrf.mxu0
      %v2782 = vadd.f32 %v2517, %v2781
      %v2783 = vpop.f32.mrf.mxu0
      %v2784 = vadd.f32 %v2519, %v2783
      %2785 = vdwg.mxu0
      %v2786 = vand.u32 %v236, 4294901760
      %2787 = vmatprep.subr.mxu0 %v2786
      %v2788 = vand.u32 %v235, 4294901760
      %2789 = vmatpush1.msra.mxu0 %v2788
      %v2790 = vand.u32 %v234, 4294901760
      %2791 = vmatprep.subr.mxu0 %v2790
      %v2792 = vand.u32 %v233, 4294901760
      %2793 = vmatpush1.msra.mxu0 %v2792
      %v2794 = vand.u32 %v232, 4294901760
      %2795 = vmatprep.subr.mxu0 %v2794
      %v2796 = vand.u32 %v231, 4294901760
      %2797 = vmatpush1.msra.mxu0 %v2796
      %v2798 = vand.u32 %v230, 4294901760
      %2799 = vmatprep.subr.mxu0 %v2798
      %v2800 = vand.u32 %v229, 4294901760
      %2801 = vmatpush1.msra.mxu0 %v2800
      %v2802 = vand.u32 %v228, 4294901760
      %2803 = vmatprep.subr.mxu0 %v2802
      %v2804 = vand.u32 %v227, 4294901760
      %2805 = vmatpush1.msra.mxu0 %v2804
      %v2806 = vand.u32 %v226, 4294901760
      %2807 = vmatprep.subr.mxu0 %v2806
      %v2808 = vand.u32 %v225, 4294901760
      %2809 = vmatpush1.msra.mxu0 %v2808
      %v2810 = vand.u32 %v224, 4294901760
      %2811 = vmatprep.subr.mxu0 %v2810
      %v2812 = vand.u32 %v223, 4294901760
      %2813 = vmatpush1.msra.mxu0 %v2812
      %v2814 = vand.u32 %v222, 4294901760
      %2815 = vmatprep.subr.mxu0 %v2814
      %v2816 = vand.u32 %v221, 4294901760
      %2817 = vmatpush1.msra.mxu0 %v2816
      %v2818 = vand.u32 %v220, 4294901760
      %2819 = vmatprep.subr.mxu0 %v2818
      %v2820 = vand.u32 %v219, 4294901760
      %2821 = vmatpush1.msra.mxu0 %v2820
      %v2822 = vand.u32 %v218, 4294901760
      %2823 = vmatprep.subr.mxu0 %v2822
      %v2824 = vand.u32 %v217, 4294901760
      %2825 = vmatpush1.msra.mxu0 %v2824
      %v2826 = vand.u32 %v216, 4294901760
      %2827 = vmatprep.subr.mxu0 %v2826
      %v2828 = vand.u32 %v215, 4294901760
      %2829 = vmatpush1.msra.mxu0 %v2828
      %v2830 = vand.u32 %v214, 4294901760
      %2831 = vmatprep.subr.mxu0 %v2830
      %v2832 = vand.u32 %v213, 4294901760
      %2833 = vmatpush1.msra.mxu0 %v2832
      %v2834 = vand.u32 %v212, 4294901760
      %2835 = vmatprep.subr.mxu0 %v2834
      %v2836 = vand.u32 %v211, 4294901760
      %2837 = vmatpush1.msra.mxu0 %v2836
      %v2838 = vand.u32 %v210, 4294901760
      %2839 = vmatprep.subr.mxu0 %v2838
      %v2840 = vand.u32 %v209, 4294901760
      %2841 = vmatpush1.msra.mxu0 %v2840
      %v2842 = vand.u32 %v208, 4294901760
      %2843 = vmatprep.subr.mxu0 %v2842
      %v2844 = vand.u32 %v207, 4294901760
      %2845 = vmatpush1.msra.mxu0 %v2844
      %v2846 = vand.u32 %v206, 4294901760
      %2847 = vmatprep.subr.mxu0 %v2846
      %v2848 = vand.u32 %v205, 4294901760
      %2849 = vmatpush1.msra.mxu0 %v2848
      %v2850 = vand.u32 %v268, 4294901760
      %2851 = vmatprep.subr.mxu0 %v2850
      %v2852 = vand.u32 %v267, 4294901760
      %2853 = vmatpush2.msra.mxu0 %v2852
      %v2854 = vand.u32 %v266, 4294901760
      %2855 = vmatprep.subr.mxu0 %v2854
      %v2856 = vand.u32 %v265, 4294901760
      %2857 = vmatpush2.msra.mxu0 %v2856
      %v2858 = vand.u32 %v264, 4294901760
      %2859 = vmatprep.subr.mxu0 %v2858
      %v2860 = vand.u32 %v263, 4294901760
      %2861 = vmatpush2.msra.mxu0 %v2860
      %v2862 = vand.u32 %v262, 4294901760
      %2863 = vmatprep.subr.mxu0 %v2862
      %v2864 = vand.u32 %v261, 4294901760
      %2865 = vmatpush2.msra.mxu0 %v2864
      %v2866 = vand.u32 %v260, 4294901760
      %2867 = vmatprep.subr.mxu0 %v2866
      %v2868 = vand.u32 %v259, 4294901760
      %2869 = vmatpush2.msra.mxu0 %v2868
      %v2870 = vand.u32 %v258, 4294901760
      %2871 = vmatprep.subr.mxu0 %v2870
      %v2872 = vand.u32 %v257, 4294901760
      %2873 = vmatpush2.msra.mxu0 %v2872
      %v2874 = vand.u32 %v256, 4294901760
      %2875 = vmatprep.subr.mxu0 %v2874
      %v2876 = vand.u32 %v255, 4294901760
      %2877 = vmatpush2.msra.mxu0 %v2876
      %v2878 = vand.u32 %v254, 4294901760
      %2879 = vmatprep.subr.mxu0 %v2878
      %v2880 = vand.u32 %v253, 4294901760
      %2881 = vmatpush2.msra.mxu0 %v2880
      %v2882 = vand.u32 %v252, 4294901760
      %2883 = vmatprep.subr.mxu0 %v2882
      %v2884 = vand.u32 %v251, 4294901760
      %2885 = vmatpush2.msra.mxu0 %v2884
      %v2886 = vand.u32 %v250, 4294901760
      %2887 = vmatprep.subr.mxu0 %v2886
      %v2888 = vand.u32 %v249, 4294901760
      %2889 = vmatpush2.msra.mxu0 %v2888
      %v2890 = vand.u32 %v248, 4294901760
      %2891 = vmatprep.subr.mxu0 %v2890
      %v2892 = vand.u32 %v247, 4294901760
      %2893 = vmatpush2.msra.mxu0 %v2892
      %v2894 = vand.u32 %v246, 4294901760
      %2895 = vmatprep.subr.mxu0 %v2894
      %v2896 = vand.u32 %v245, 4294901760
      %2897 = vmatpush2.msra.mxu0 %v2896
      %v2898 = vand.u32 %v244, 4294901760
      %2899 = vmatprep.subr.mxu0 %v2898
      %v2900 = vand.u32 %v243, 4294901760
      %2901 = vmatpush2.msra.mxu0 %v2900
      %v2902 = vand.u32 %v242, 4294901760
      %2903 = vmatprep.subr.mxu0 %v2902
      %v2904 = vand.u32 %v241, 4294901760
      %2905 = vmatpush2.msra.mxu0 %v2904
      %v2906 = vand.u32 %v240, 4294901760
      %2907 = vmatprep.subr.mxu0 %v2906
      %v2908 = vand.u32 %v239, 4294901760
      %2909 = vmatpush2.msra.mxu0 %v2908
      %v2910 = vand.u32 %v238, 4294901760
      %2911 = vmatprep.subr.mxu0 %v2910
      %v2912 = vand.u32 %v237, 4294901760
      %2913 = vmatpush2.msra.mxu0 %v2912
      %v2914 = vand.u32 %v1636, 4294901760
      %2915 = vmatprep.mubr.f32.mxu0 %v2914
      %v2916 = vand.u32 %v1635, 4294901760
      %2917 = vmatmul.mubr.f32.gmra.mxu0 %v2916
      %v2918 = vpop.f32.mrf.mxu0
      %v2919 = vadd.f32 %v2782, %v2918
      %v2920 = vpop.f32.mrf.mxu0
      %v2921 = vadd.f32 %v2784, %v2920
      %2922 = vdwg.mxu0
      %s2923 = sld [smem:[#allocation4]]
      %v2924 = vstv %s2923
      %v2925 = vadd.f32 %v2919, %v2924
      %v2926 = vadd.f32 %v2921, %v2924
      %v2927 = vxor.u32 %v2925, 2147483648
      %v2928 = vxor.u32 %v2926, 2147483648
      %v2929 = vmul.f32 %v2927, 1.442695
      %v2930 = vpow.pop %v2929
      %v2931 = vmul.f32 %v2928, 1.442695
      %v2932 = vpow.pop %v2931
      %v2933 = vadd.f32 %v2930, 1.0
      %v2934 = vadd.f32 %v2932, 1.0
      %v2935 = vrcp.pop %v2933
      %v2936 = vmul.f32 1.0, %v2935
      %v2937 = vrcp.pop %v2934
      %v2938 = vmul.f32 1.0, %v2937
      %v2941 = vcombine.low %v2936, %v2938
      %v2943 = vunpack.c.l.s4 1966171168
      %v2944 = vunpack.c.0.s8 %v2943
      %v2945 = vlaneseq
      %v2946 = vshrl.u32 %v2945, 7
      %v2947 = vsub.s32 %v2944, %v2946
      %v2948 = vrot.slane %v2941, %v2947
      %v2949 = vcombine.high %v2948, %v2948
      %v2951 = vunpack.c.l.s4 1966171168
      %v2952 = vunpack.c.0.s8 %v2951
      %v2953 = vlaneseq
      %v2954 = vshrl.u32 %v2953, 7
      %v2955 = vsub.s32 %v2952, %v2954
      %v2956 = vrot.slane %v2948, %v2955
      %v2958 = vunpack.c.l.s4 1966171168
      %v2959 = vunpack.c.0.s8 %v2958
      %v2960 = vlaneseq
      %v2961 = vshrl.u32 %v2960, 7
      %v2962 = vsub.s32 %v2959, %v2961
      %v2963 = vrot.slane %v2949, %v2962
      %v2966 = vlaneseq
      %vm2967 = vcmp.ge.s32.totalorder %v2966, 0
      %vm2968 = vcmp.lt.s32.totalorder %v2966, 256
      %vm2969 = vmand %vm2967, %vm2968
      %2970 = vst.msk [vmem:[#allocation11] sm:$0x3] %vm2969, %v2956
      %2971 = vst.msk [vmem:[#allocation11 + $0x2] sm:$0x3] %vm2969, %v2963
    $region37: #{tpu_custom_call.1} parent=1 // pred_fallthru
      _
    // Predicated region
    $region38: #{tpu_custom_call.1} parent=1 // pred_check
      _
    $region39: #{tpu_custom_call.1} parent=1 // pred_check_branch
      %2973 = sbr.rel (0) target = $region41
    $region40: #{tpu_custom_call.1} parent=1 // pred_region
      %s2975 = ssub.s32 64, 64
      %2976 = vsyncadd [#allocation7], %s2975
      %s2977 = sshll.u32 [#allocation11], 4
      %s2978 = int_to_ptr.vmem [resolvable:$true] %s2977
      %2983 = dma.vmem_to_hbm [thread:$0]  %s2978, 64, %s4, [#allocation7], 32, 32, 2
    $region41: #{tpu_custom_call.1} parent=1 // pred_fallthru
      _
    // Predicated region
    $region42: #{tpu_custom_call.1} parent=1 // pred_check
      _
    $region43: #{tpu_custom_call.1} parent=1 // pred_check_branch
      %2985 = sbr.rel (0) target = $region45
    $region44: #{tpu_custom_call.1} parent=1 // pred_region
      %2986 = dma.done [#allocation7], 64
    $region45: #{tpu_custom_call.1} parent=1 // pred_fallthru
      _
    %2987 = vsyncpa [#allocation6], 1
    %2988 = vsyncpa [#allocation9], 1
    %2989 = vsyncpa [#allocation7], 1

</llo_original>
